<compile_context>
chip_gen: v7x
topology: tpu7x:2x2x1
jax: 0.10.0
libtpu: 0.0.40
codegen_flags: <defaults>
</compile_context>

<pallas_src>
import functools
import math

import jax
import jax.numpy as jnp
from jax import lax
from jax.experimental import pallas as pl
from jax.experimental.pallas import tpu as pltpu


_PAD_SENTINEL = 1e30  # padded rows -> dist ~ 1e31 -> exp(-dist) == 0 exactly.


def _round_up(v, m):
    return (v + m - 1) // m * m


def _mbd_kernel(sel_ref, mj_ref, mi_ref, out_ref, acc_ref, *, chunk, pairwise_dtype):
    """One (j-tile, i-tile) grid step.

    sel_ref : (B, BC)      block-diagonal C-group selector (resident constant)
    mj_ref  : (TJ, BC)     projected rows M for this j tile
    mi_ref  : (TI, BC)     projected rows M for this i tile (reduction axis)
    out_ref : (B, TJ)      lane-dense minibatch features (transposed)
    acc_ref : (B, TJ) f32  VMEM accumulator: sum_i exp(-dist)
    """
    i = pl.program_id(1)
    num_i = pl.num_programs(1)

    @pl.when(i == 0)
    def _init():
        acc_ref[...] = jnp.zeros_like(acc_ref)

    tj, bc = mj_ref.shape
    ti = mi_ref.shape[0]
    b = sel_ref.shape[0]
    n_chunks = ti // chunk

    mj = mj_ref[...].astype(pairwise_dtype)        # (TJ, BC)  lane-dense
    sel_t = sel_ref[...].astype(pairwise_dtype)    # (B, BC)

    def chunk_body(ci, acc):
        start = pl.multiple_of(ci * chunk, chunk)
        mi_c = mi_ref[pl.ds(start, chunk), :].astype(pairwise_dtype)      # (chunk, BC)
        # Pairwise L1 diffs, lane-dense along BC (VPU work — the binding slot).
        d = jnp.abs(mi_c[:, None, :] - mj[None, :, :])                    # (chunk, TJ, BC)
        d2 = d.reshape(chunk * tj, bc)                                    # merge leading dims (free)
        # C-group reduce on the MXU, producing the *transposed* distance so
        # everything downstream (exp, accumulate, store) is lane-dense.
        # d2.T is a tile-aligned transpose -> runs on the XLU slot.
        dist_t = jnp.dot(sel_t, d2.T, preferred_element_type=jnp.float32)  # (B, chunk*TJ)
        e_t = jnp.exp(-dist_t)                                            # EUP, full 128-lane rows
        return acc + e_t.reshape(b, chunk, tj).sum(axis=1)                # (B, TJ)

    acc_ref[...] = lax.fori_loop(0, n_chunks, chunk_body, acc_ref[...], unroll=True)

    @pl.when(i == num_i - 1)
    def _finalize():
        # -1 removes the exact i == j self term (exp(0) == 1).
        out_ref[...] = (acc_ref[...] - 1.0).astype(out_ref.dtype)


def minibatch_discrimination(x, T, *, tile_j=128, tile_i=128, chunk=16,
                             pairwise_dtype=jnp.float32):
    """x: (N, A), T: (A, B, C)  ->  (N, A + B)   (== torch.cat([x, out], 1)).

    pairwise_dtype: set to jnp.bfloat16 on v6e/v7x to halve the binding VPU
    work on |M_i - M_j| (keep float32 on v5e: no bf16 VPU).  Accumulation and
    the exp-sum stay float32 either way.
    """
    n, a = x.shape
    a2, b, c = T.shape
    assert a == a2, (a, a2)
    bc = b * c

    # ---- Hoisted projection (done once in XLA, not per i-tile in-kernel). --
    m = jnp.dot(x, T.reshape(a, bc)).astype(jnp.float32)                  # (N, BC)

    # ---- Legal, generation-portable tile choice. ---------------------------
    n8 = _round_up(n, 8)
    tile_i = min(_round_up(tile_i, 8), n8)
    if _round_up(tile_j, 128) >= n8:
        # Single j tile: full-width output block is always layout-legal.
        tile_j = _round_up(n8, tile_i)
        n_pad = tile_j
    else:
        tile_j = _round_up(tile_j, 128)        # output last dim must be 128-aligned
        n_pad = _round_up(n, math.lcm(tile_i, tile_j))
    chunk = max(8, min(chunk, tile_i))
    while tile_i % chunk:
        chunk -= 8
    grid = (n_pad // tile_j, n_pad // tile_i)

    # ---- Sentinel padding: padded rows contribute exp(-huge) == 0. ---------
    if n_pad > n:
        pad = jnp.full((n_pad - n, bc), _PAD_SENTINEL, dtype=m.dtype)
        m = jnp.concatenate([m, pad], axis=0)

    # ---- Block-diagonal selector, built once, resident across the grid. ----
    groups = jnp.arange(bc, dtype=jnp.int32) // c
    sel_t = (groups[None, :] ==
             jnp.arange(b, dtype=jnp.int32)[:, None]).astype(jnp.float32)  # (B, BC)

    kernel = functools.partial(_mbd_kernel, chunk=chunk, pairwise_dtype=pairwise_dtype)

    cost = pl.CostEstimate(
        flops=int(2 * n_pad * n_pad * bc * b + 3 * n_pad * n_pad * bc),
        transcendentals=int(n_pad * n_pad * b),
        bytes_accessed=int(4 * (n_pad * bc * (1 + grid[0]) + b * bc + b * n_pad)),
    )

    feat_t = pl.pallas_call(
        kernel,
        out_shape=jax.ShapeDtypeStruct((b, n_pad), jnp.float32),
        grid_spec=pltpu.PrefetchScalarGridSpec(
            num_scalar_prefetch=0,
            grid=grid,                                             # (j tiles, i tiles)
            in_specs=[
                pl.BlockSpec((b, bc), lambda j, i: (0, 0)),        # sel_T (constant)
                pl.BlockSpec((tile_j, bc), lambda j, i: (j, 0)),   # M rows for j
                pl.BlockSpec((tile_i, bc), lambda j, i: (i, 0)),   # M rows for i
            ],
            out_specs=pl.BlockSpec((b, tile_j), lambda j, i: (0, j)),
            scratch_shapes=[pltpu.VMEM((b, tile_j), jnp.float32)],
        ),
        compiler_params=pltpu.CompilerParams(
            dimension_semantics=("parallel", "arbitrary"),
            vmem_limit_bytes=32 * 1024 * 1024,
        ),
        cost_estimate=cost,
    )(sel_t, m, m)

    feat = feat_t[:, :n].T.astype(x.dtype)                                # (N, B)
    return jnp.concatenate([x, feat], axis=1)                             # (N, A + B)


def _reference(x, T):
    """Pure-JAX mirror of the PyTorch forward."""
    a, b, c = T.shape
    m = jnp.dot(x, T.reshape(a, b * c))
    m = m.reshape(-1, b, c)[None]                  # (1, N, B, C)
    m_t = jnp.transpose(m, (1, 0, 2, 3))           # (N, 1, B, C)
    out = jnp.sum(jnp.exp(-jnp.abs(m - m_t).sum(3)), axis=0) - 1.0
    return jnp.concatenate([x, out], axis=1)


if __name__ == "__main__":
    # Module hyper-params: input_features=16, output_features=8, hidden=16
    # (B*C = 128 -> the projected M rows are exactly lane-dense).
    A, B, C = 16, 8, 16
    key = jax.random.PRNGKey(0)
    kx, kt = jax.random.split(key)
    T = jax.random.normal(kt, (A, B, C), dtype=jnp.float32)

    # Run 1: small batch, N not tile-aligned -> exercises sentinel padding and
    # the i-reduction accumulator (grid = (1, 2)).
    n1 = 60
    x1 = 0.05 * jax.random.normal(kx, (n1, A), dtype=jnp.float32)
    y1 = jax.block_until_ready(minibatch_discrimination(x1, T, tile_i=32, chunk=16))
    r1 = _reference(x1, T)
    assert y1.shape == (n1, A + B), y1.shape
    assert jnp.allclose(y1, r1, atol=5e-3, rtol=5e-3), "run-1 mismatch vs reference"

    # Run 2: production-shaped path — 128-wide tiles, multi-tile parallel j
    # and multi-step i reduction (grid = (2, 2)).
    n2 = 256
    x2 = 0.05 * jax.random.normal(jax.random.PRNGKey(1), (n2, A), dtype=jnp.float32)
    y2 = jax.block_until_ready(minibatch_discrimination(x2, T))
    r2 = _reference(x2, T)
    assert y2.shape == (n2, A + B), y2.shape
    assert jnp.allclose(y2, r2, atol=5e-3, rtol=5e-3), "run-2 mismatch vs reference"

    print("KERNEL_OK")
</pallas_src>

<mosaic_0001>
module attributes {stable_mosaic.version = 11 : i64} {
  func.func @_mbd_kernel(%arg0: i32, %arg1: i32, %arg2: memref<8x128xf32, #tpu.memory_space<vmem>>, %arg3: memref<64x128xf32, #tpu.memory_space<vmem>>, %arg4: memref<32x128xf32, #tpu.memory_space<vmem>>, %arg5: memref<8x64xf32, #tpu.memory_space<vmem>>, %arg6: memref<8x64xf32, #tpu.memory_space<vmem>>) attributes {dimension_semantics = [#tpu.dimension_semantics<parallel>, #tpu.dimension_semantics<arbitrary>], iteration_bounds = array<i64: 1, 2>, scalar_prefetch = 0 : i64, scratch_operands = 1 : i64, tpu.core_type = #tpu.core_type<tc>, window_params = [{pipeline_mode = #tpu.pipeline_mode<synchronous>, transform_indices = @transform_0, window_bounds = array<i64: 8, 128>}, {transform_indices = @transform_1, window_bounds = array<i64: 64, 128>}, {transform_indices = @transform_2, window_bounds = array<i64: 32, 128>}, {transform_indices = @transform_3, window_bounds = array<i64: 8, 64>}]} {
    %c0_i32 = arith.constant 0 : i32
    %0 = arith.cmpi eq, %arg1, %c0_i32 : i32
    %1 = arith.extui %0 : i1 to i32
    %c0_i32_0 = arith.constant 0 : i32
    %2 = arith.cmpi ne, %1, %c0_i32_0 : i32
    scf.if %2 {
      %cst_19 = arith.constant 0.000000e+00 : f32
      %48 = vector.broadcast %cst_19 : f32 to vector<8x64xf32>
      %c0_20 = arith.constant 0 : index
      %c0_21 = arith.constant 0 : index
      %49 = vector.load %arg6[%c0_20, %c0_21] : memref<8x64xf32, #tpu.memory_space<vmem>>, vector<8x64xf32>
      tpu.vector_store %arg6[%c0_20, %c0_21], %48 {strides = array<i32>} : memref<8x64xf32, #tpu.memory_space<vmem>>, vector<8x64xf32>,
    } else {
    }
    %c0 = arith.constant 0 : index
    %c0_1 = arith.constant 0 : index
    %3 = vector.load %arg3[%c0, %c0_1] : memref<64x128xf32, #tpu.memory_space<vmem>>, vector<64x128xf32>
    %c0_2 = arith.constant 0 : index
    %c0_3 = arith.constant 0 : index
    %4 = vector.load %arg2[%c0_2, %c0_3] : memref<8x128xf32, #tpu.memory_space<vmem>>, vector<8x128xf32>
    %c0_4 = arith.constant 0 : index
    %c0_5 = arith.constant 0 : index
    %5 = vector.load %arg6[%c0_4, %c0_5] : memref<8x64xf32, #tpu.memory_space<vmem>>, vector<8x64xf32>
    %c0_i32_6 = arith.constant 0 : i32
    %c16_i32 = arith.constant 16 : i32
    %6 = arith.muli %c0_i32_6, %c16_i32 : i32
    %7 = tpu.assume_multiple %6, 16 : i32
    %8 = arith.index_cast %7 : i32 to index
    %c0_7 = arith.constant 0 : index
    %9 = vector.load %arg4[%8, %c0_7] : memref<32x128xf32, #tpu.memory_space<vmem>>, vector<16x128xf32>
    %10 = vector.shape_cast %9 : vector<16x128xf32> to vector<16x1x128xf32>
    %11 = vector.shape_cast %3 : vector<64x128xf32> to vector<1x64x128xf32>
    %12 = vector.broadcast %10 : vector<16x1x128xf32> to vector<16x64x128xf32>
    %13 = vector.broadcast %11 : vector<1x64x128xf32> to vector<16x64x128xf32>
    %14 = arith.subf %12, %13 : vector<16x64x128xf32>
    %15 = math.absf %14 : vector<16x64x128xf32>
    %16 = vector.shape_cast %15 : vector<16x64x128xf32> to vector<1024x128xf32>
    %17 = tpu.transpose %16, [1, 0] : vector<1024x128xf32> -> vector<128x1024xf32>
    %cst = arith.constant dense<0.000000e+00> : vector<8x1024xf32>
    %18 = tpu.matmul %4, %17, %cst {dimension_numbers = #tpu.dot_dimension_numbers<[1], [0], [0], [1], [0, 0, 1, 1], [], []>} : vector<8x128xf32>, vector<128x1024xf32>, vector<8x1024xf32> -> vector<8x1024xf32>
    %cst_8 = arith.constant 0.000000e+00 : f32
    %19 = vector.broadcast %cst_8 : f32 to vector<8x1024xf32>
    %20 = arith.subf %19, %18 : vector<8x1024xf32>
    %21 = math.exp %20 : vector<8x1024xf32>
    %22 = vector.shape_cast %21 : vector<8x1024xf32> to vector<8x16x64xf32>
    %cst_9 = arith.constant dense<0.000000e+00> : vector<8x64xf32>
    %23 = vector.multi_reduction <add>, %22, %cst_9 [1] : vector<8x16x64xf32> to vector<8x64xf32>
    %24 = arith.addf %5, %23 : vector<8x64xf32>
    %c1_i32 = arith.constant 1 : i32
    %c16_i32_10 = arith.constant 16 : i32
    %25 = arith.muli %c1_i32, %c16_i32_10 : i32
    %26 = tpu.assume_multiple %25, 16 : i32
    %27 = arith.index_cast %26 : i32 to index
    %c0_11 = arith.constant 0 : index
    %28 = vector.load %arg4[%27, %c0_11] : memref<32x128xf32, #tpu.memory_space<vmem>>, vector<16x128xf32>
    %29 = vector.shape_cast %28 : vector<16x128xf32> to vector<16x1x128xf32>
    %30 = vector.shape_cast %3 : vector<64x128xf32> to vector<1x64x128xf32>
    %31 = vector.broadcast %29 : vector<16x1x128xf32> to vector<16x64x128xf32>
    %32 = vector.broadcast %30 : vector<1x64x128xf32> to vector<16x64x128xf32>
    %33 = arith.subf %31, %32 : vector<16x64x128xf32>
    %34 = math.absf %33 : vector<16x64x128xf32>
    %35 = vector.shape_cast %34 : vector<16x64x128xf32> to vector<1024x128xf32>
    %36 = tpu.transpose %35, [1, 0] : vector<1024x128xf32> -> vector<128x1024xf32>
    %cst_12 = arith.constant dense<0.000000e+00> : vector<8x1024xf32>
    %37 = tpu.matmul %4, %36, %cst_12 {dimension_numbers = #tpu.dot_dimension_numbers<[1], [0], [0], [1], [0, 0, 1, 1], [], []>} : vector<8x128xf32>, vector<128x1024xf32>, vector<8x1024xf32> -> vector<8x1024xf32>
    %cst_13 = arith.constant 0.000000e+00 : f32
    %38 = vector.broadcast %cst_13 : f32 to vector<8x1024xf32>
    %39 = arith.subf %38, %37 : vector<8x1024xf32>
    %40 = math.exp %39 : vector<8x1024xf32>
    %41 = vector.shape_cast %40 : vector<8x1024xf32> to vector<8x16x64xf32>
    %cst_14 = arith.constant dense<0.000000e+00> : vector<8x64xf32>
    %42 = vector.multi_reduction <add>, %41, %cst_14 [1] : vector<8x16x64xf32> to vector<8x64xf32>
    %43 = arith.addf %24, %42 : vector<8x64xf32>
    %c2_i32 = arith.constant 2 : i32
    %c0_15 = arith.constant 0 : index
    %c0_16 = arith.constant 0 : index
    %44 = vector.load %arg6[%c0_15, %c0_16] : memref<8x64xf32, #tpu.memory_space<vmem>>, vector<8x64xf32>
    tpu.vector_store %arg6[%c0_15, %c0_16], %43 {strides = array<i32>} : memref<8x64xf32, #tpu.memory_space<vmem>>, vector<8x64xf32>,
    %c1_i32_17 = arith.constant 1 : i32
    %45 = arith.cmpi eq, %arg1, %c1_i32_17 : i32
    %46 = arith.extui %45 : i1 to i32
    %c0_i32_18 = arith.constant 0 : i32
    %47 = arith.cmpi ne, %46, %c0_i32_18 : i32
    scf.if %47 {
      %c0_19 = arith.constant 0 : index
      %c0_20 = arith.constant 0 : index
      %48 = vector.load %arg6[%c0_19, %c0_20] : memref<8x64xf32, #tpu.memory_space<vmem>>, vector<8x64xf32>
      %cst_21 = arith.constant 1.000000e+00 : f32
      %49 = vector.broadcast %cst_21 : f32 to vector<8x64xf32>
      %50 = arith.subf %48, %49 : vector<8x64xf32>
      %c0_22 = arith.constant 0 : index
      %c0_23 = arith.constant 0 : index
      %51 = vector.load %arg5[%c0_22, %c0_23] : memref<8x64xf32, #tpu.memory_space<vmem>>, vector<8x64xf32>
      tpu.vector_store %arg5[%c0_22, %c0_23], %50 {strides = array<i32>} : memref<8x64xf32, #tpu.memory_space<vmem>>, vector<8x64xf32>,
    } else {
    }
    return
  }
  func.func @transform_0(%arg0: i32, %arg1: i32) -> (i32, i32) {
    %c0_i32 = arith.constant 0 : i32
    %c0_i32_0 = arith.constant 0 : i32
    %c0_i32_1 = arith.constant 0 : i32
    return %c0_i32, %c0_i32_0 : i32, i32
  }
  func.func @transform_1(%arg0: i32, %arg1: i32) -> (i32, i32) {
    %c0_i32 = arith.constant 0 : i32
    %c0_i32_0 = arith.constant 0 : i32
    return %arg0, %c0_i32 : i32, i32
  }
  func.func @transform_2(%arg0: i32, %arg1: i32) -> (i32, i32) {
    %c0_i32 = arith.constant 0 : i32
    %c0_i32_0 = arith.constant 0 : i32
    return %arg1, %c0_i32 : i32, i32
  }
  func.func @transform_3(%arg0: i32, %arg1: i32) -> (i32, i32) {
    %c0_i32 = arith.constant 0 : i32
    %c0_i32_0 = arith.constant 0 : i32
    return %c0_i32, %arg0 : i32, i32
  }
}

</mosaic_0001>

<llo_original>
// kernel: tpu_custom_call.1
$region0: #{tpu_custom_call.1}
  #allocation0 [shape = 'u32[]', space=smem, size = 0x4, offset = 0x4, fixed_abs, tag = 'smem constant byte address 0x4 - core index']
  #allocation1 [shape = 'u32[144,128]{1,0:T(1,128)}', space=vmem, size = 0x12000, scoped, tag = 'internal scratch']
  #allocation2 [shape = 'f32[8,64]{1,0:T(8,128)}', space=vmem, size = 0x1000, scoped, tag = 'scratch operand']
  %s0 = inlined_call_operand.hbm [shape: f32[8,128], index: 0, kind: input, shape index: {}]
  %s1 = inlined_call_operand.hbm [shape: f32[64,128], index: 1, kind: input, shape index: {}]
  %s2 = inlined_call_operand.hbm [shape: f32[64,128], index: 2, kind: input, shape index: {}]
  %s3 = inlined_call_operand.hbm [shape: f32[8,64], index: 3, kind: output, shape index: {}]
  %s4 = sld [smem:[#allocation0]]
  $region65: #{tpu_custom_call.1} parent=0
    _
  %s6 = ssub.s32 1, %s4
  %s7 = scalar_select 0, %s6, %s4
  $region1: #{tpu_custom_call.1} parent=0
    #allocation3 [shape = 'u8[4096]{0}', space=vmem, size = 0x1000, scoped, tag = 'input window, operand 0, single buffered']
    #allocation4 [shape = 's32[2]{0}', space=sflag, size = 0x8, scoped, tag = 'scoped memory for tpu_custom_call.1']
    #allocation5 [shape = 's32[2]{0}', space=sflag, size = 0x8, scoped, tag = 'scoped memory for tpu_custom_call.1']
    #allocation6 [shape = 'u8[32768]{0}', space=vmem, size = 0x8000, scoped, tag = 'input window, operand 1, single buffered']
    #allocation7 [shape = 's32[1]{0}', space=sflag, size = 0x4, scoped, tag = 'scoped memory for tpu_custom_call.1']
    #allocation8 [shape = 'u8[32768]{0}', space=vmem, size = 0x8000, scoped, tag = 'input window, operand 2']
    #allocation9 [shape = 'u8[4096]{0}', space=vmem, size = 0x1000, scoped, tag = 'output window, operand 0, single buffered']
    %8 = vsyncpa [#allocation4], 0
    %9 = vsyncpa [#allocation7], 0
    %10 = vsyncpa [#allocation5], 0
    loop: start=0, step=1, limit=4
    $region2: #{tpu_custom_call.1} parent=1 // loop_pre_header
      _
    $region3: #{tpu_custom_call.1} parent=1 // loop_header
      %s12 = sphi 0, %s16
      %p13 = scmp.ge.s32.totalorder %s12, 4
      %s19 = sphi 0, %s31
      %s20 = sphi 0, %s27
      %s21 = sphi 0, %s19
      %s22 = sphi 0, %s20
      %s23 = sphi 0, %s21
      %s24 = sphi 0, %s22
      %s32 = sphi 0, %s32
      %s34 = sphi 0, %s32
      %s35 = sphi 0, %s34
      %s49 = sphi 0, %s35
      %s55 = sphi 0, %s57
      %s58 = sphi 0, %s55
      %s59 = sphi 0, %s58
      %s75 = sphi 0, %s59
      %s81 = sphi 0, %s83
      %s84 = sphi 0, %s81
      %s85 = sphi 0, %s84
      %s101 = sphi 0, %s85
      %s107 = sphi 0, %s109
      %s110 = sphi 0, %s107
      %s111 = sphi 0, %s110
      %s127 = sphi 0, %s111
    $region4: #{tpu_custom_call.1} parent=1 // loop_header_branch
      %15 = sbr.rel (%p13) target = $region8
    $region5: #{tpu_custom_call.1} parent=1 // loop_body
      %s17 = ssub.s32 %s12, 1
      %s18 = ssub.s32 %s12, 2
      %s25 = sadd.s32 1, %s20
      %p26 = scmp.ge.s32.totalorder %s25, 2
      %s27 = scalar_select %p26, 0, %s25
      %s28 = sadd.s32 1, %s19
      %s29 = scalar_select %p26, %s28, %s19
      %p30 = scmp.ge.s32.totalorder %s29, 1
      %s31 = scalar_select %p30, 0, %s29
      %s33 = sadd.s32 %s32, 1
      %p36 = scmp.eq.s32.totalorder %s12, 1
      %p37 = scmp.ne.s32.totalorder %s32, %s34
      %p38 = scmp.eq.s32.totalorder %s12, 0
      %p39 = por %p37, %p38
      %p40 = scmp.ne.s32.totalorder %s32, %s34
      %p41 = scmp.eq.s32.totalorder %s17, 1
      %p42 = por %p40, %p41
      %p43 = scmp.ne.s32.totalorder %s34, %s35
      %p44 = scmp.eq.s32.totalorder %s17, 0
      %p45 = por %p43, %p44
      %p46 = scmp.ne.s32.totalorder %s34, %s35
      %p47 = scmp.eq.s32.totalorder %s18, 1
      %p48 = por %p46, %p47
      %p50 = scmp.ne.s32.totalorder %s35, %s49
      %p51 = scmp.eq.s32.totalorder %s18, 0
      %p52 = por %p50, %p51
      %s53 = ssub.s32 %s19, %s31
      %p54 = scmp.eq.s32.totalorder %s53, 0
      %s56 = sadd.s32 %s55, 1
      %s57 = scalar_select %p54, %s55, %s56
      %p60 = pneg %p54
      %p61 = scmp.eq.s32.totalorder %s12, 1
      %p62 = por %p60, %p61
      %p63 = scmp.ne.s32.totalorder %s55, %s58
      %p64 = scmp.eq.s32.totalorder %s12, 0
      %p65 = por %p63, %p64
      %p66 = scmp.ne.s32.totalorder %s55, %s58
      %p67 = scmp.eq.s32.totalorder %s17, 1
      %p68 = por %p66, %p67
      %p69 = scmp.ne.s32.totalorder %s58, %s59
      %p70 = scmp.eq.s32.totalorder %s17, 0
      %p71 = por %p69, %p70
      %p72 = scmp.ne.s32.totalorder %s58, %s59
      %p73 = scmp.eq.s32.totalorder %s18, 1
      %p74 = por %p72, %p73
      %p76 = scmp.ne.s32.totalorder %s59, %s75
      %p77 = scmp.eq.s32.totalorder %s18, 0
      %p78 = por %p76, %p77
      %s79 = ssub.s32 %s20, %s27
      %p80 = scmp.eq.s32.totalorder %s79, 0
      %s82 = sadd.s32 %s81, 1
      %s83 = scalar_select %p80, %s81, %s82
      %p86 = pneg %p80
      %p87 = scmp.eq.s32.totalorder %s12, 1
      %p88 = por %p86, %p87
      %p89 = scmp.ne.s32.totalorder %s81, %s84
      %p90 = scmp.eq.s32.totalorder %s12, 0
      %p91 = por %p89, %p90
      %p92 = scmp.ne.s32.totalorder %s81, %s84
      %p93 = scmp.eq.s32.totalorder %s17, 1
      %p94 = por %p92, %p93
      %p95 = scmp.ne.s32.totalorder %s84, %s85
      %p96 = scmp.eq.s32.totalorder %s17, 0
      %p97 = por %p95, %p96
      %p98 = scmp.ne.s32.totalorder %s84, %s85
      %p99 = scmp.eq.s32.totalorder %s18, 1
      %p100 = por %p98, %p99
      %p102 = scmp.ne.s32.totalorder %s85, %s101
      %p103 = scmp.eq.s32.totalorder %s18, 0
      %p104 = por %p102, %p103
      %s105 = ssub.s32 %s19, %s31
      %p106 = scmp.eq.s32.totalorder %s105, 0
      %s108 = sadd.s32 %s107, 1
      %s109 = scalar_select %p106, %s107, %s108
      %p112 = pneg %p106
      %p113 = scmp.eq.s32.totalorder %s12, 1
      %p114 = por %p112, %p113
      %p115 = scmp.ne.s32.totalorder %s107, %s110
      %p116 = scmp.eq.s32.totalorder %s12, 0
      %p117 = por %p115, %p116
      %p118 = scmp.ne.s32.totalorder %s107, %s110
      %p119 = scmp.eq.s32.totalorder %s17, 1
      %p120 = por %p118, %p119
      %p121 = scmp.ne.s32.totalorder %s110, %s111
      %p122 = scmp.eq.s32.totalorder %s17, 0
      %p123 = por %p121, %p122
      %p124 = scmp.ne.s32.totalorder %s110, %s111
      %p125 = scmp.eq.s32.totalorder %s18, 1
      %p126 = por %p124, %p125
      %p128 = scmp.ne.s32.totalorder %s111, %s127
      %p129 = scmp.eq.s32.totalorder %s18, 0
      %p130 = por %p128, %p129
      %p131 = scmp.le.s32.totalorder 1, %s12
      %p132 = scmp.lt.s32.totalorder %s12, 3
      %p133 = pnand %p131, %p132
      %p134 = pneg %p133
      // Predicated region
      $region9: #{tpu_custom_call.1} parent=5 // pred_check
        _
      $region10: #{tpu_custom_call.1} parent=5 // pred_check_branch
        %136 = sbr.rel (%p133) target = $region12
      $region11: #{tpu_custom_call.1} parent=5 // pred_region
        %s137 = ssub.s32 %s12, 1
        // Predicated region
        $region13: #{tpu_custom_call.1} parent=11 // pred_check
          %p138 = pneg %p45
        $region14: #{tpu_custom_call.1} parent=11 // pred_check_branch
          %140 = sbr.rel (%p138) target = $region16
        $region15: #{tpu_custom_call.1} parent=11 // pred_region
          %s142 = ssub.s32 128, 128
          %143 = vsyncadd [#allocation4], %s142
          %s145 = sshll.u32 [#allocation3], 4
          %s146 = int_to_ptr.vmem [resolvable:$true] %s145
          %148 = dma.hbm_to_vmem [thread:$0]  %s0, 128, %s146, [#allocation4]
        $region16: #{tpu_custom_call.1} parent=11 // pred_fallthru
          _
        // Predicated region
        $region17: #{tpu_custom_call.1} parent=11 // pred_check
          %p149 = pneg %p71
        $region18: #{tpu_custom_call.1} parent=11 // pred_check_branch
          %151 = sbr.rel (%p149) target = $region20
        $region19: #{tpu_custom_call.1} parent=11 // pred_region
          %s152 = smul.u32 8, %s21
          %s154 = ssub.s32 1024, 1024
          %155 = vsyncadd [#allocation7], %s154
          %s156 = smul.addr %s152, 128
          %s157 = scalar_lea.hbm %s1, %s156
          %s158 = sshll.u32 [#allocation6], 4
          %s159 = int_to_ptr.vmem [resolvable:$true] %s158
          %164 = dma.hbm_to_vmem [thread:$0]  %s157, 1024, %s159, [#allocation7], 128, 128, 8
        $region20: #{tpu_custom_call.1} parent=11 // pred_fallthru
          _
      $region12: #{tpu_custom_call.1} parent=5 // pred_fallthru
        _
      %p165 = scmp.lt.s32.totalorder %s12, 2
      // Predicated region
      $region21: #{tpu_custom_call.1} parent=5 // pred_check
        %p166 = pneg %p165
      $region22: #{tpu_custom_call.1} parent=5 // pred_check_branch
        %168 = sbr.rel (%p166) target = $region24
      $region23: #{tpu_custom_call.1} parent=5 // pred_region
        // Predicated region
        $region25: #{tpu_custom_call.1} parent=23 // pred_check
          %p169 = pneg %p91
        $region26: #{tpu_custom_call.1} parent=23 // pred_check_branch
          %171 = sbr.rel (%p169) target = $region28
        $region27: #{tpu_custom_call.1} parent=23 // pred_region
          %s172 = sand.u32 %s12, 1
          %s173 = scalar_lea.sflag [#allocation4], %s172
          %s174 = sand.u32 %s81, 1
          %s175 = smul.addr %s174, 32
          %s176 = scalar_lea.vmem [#allocation8], %s175
          %s177 = smul.u32 4, %s20
          %s179 = ssub.s32 512, 512
          %180 = vsyncadd %s173, %s179
          %s181 = smul.addr %s177, 128
          %s182 = scalar_lea.hbm %s2, %s181
          %s183 = sshll.u32 %s176, 4
          %s184 = int_to_ptr.vmem [resolvable:$true] %s183
          %189 = dma.hbm_to_vmem [thread:$0]  %s182, 512, %s184, %s173, 128, 128, 8
        $region28: #{tpu_custom_call.1} parent=23 // pred_fallthru
          _
      $region24: #{tpu_custom_call.1} parent=5 // pred_fallthru
        _
      %p190 = scmp.le.s32.totalorder 1, %s12
      %p191 = scmp.lt.s32.totalorder %s12, 3
      %p192 = pnand %p190, %p191
      %p193 = pneg %p192
      // Predicated region
      $region29: #{tpu_custom_call.1} parent=5 // pred_check
        _
      $region30: #{tpu_custom_call.1} parent=5 // pred_check_branch
        %195 = sbr.rel (%p192) target = $region32
      $region31: #{tpu_custom_call.1} parent=5 // pred_region
        %s196 = ssub.s32 %s12, 1
        // Predicated region
        $region33: #{tpu_custom_call.1} parent=31 // pred_check
          %p197 = pneg %p45
        $region34: #{tpu_custom_call.1} parent=31 // pred_check_branch
          %199 = sbr.rel (%p197) target = $region36
        $region35: #{tpu_custom_call.1} parent=31 // pred_region
          %200 = dma.done [#allocation4], 128
        $region36: #{tpu_custom_call.1} parent=31 // pred_fallthru
          _
        // Predicated region
        $region37: #{tpu_custom_call.1} parent=31 // pred_check
          %p201 = pneg %p71
        $region38: #{tpu_custom_call.1} parent=31 // pred_check_branch
          %203 = sbr.rel (%p201) target = $region40
        $region39: #{tpu_custom_call.1} parent=31 // pred_region
          %204 = dma.done [#allocation7], 1024
        $region40: #{tpu_custom_call.1} parent=31 // pred_fallthru
          _
        %s205 = sand.u32 %s17, 1
        %s206 = scalar_lea.sflag [#allocation4], %s205
        %s207 = sand.u32 %s84, 1
        %s208 = smul.addr %s207, 32
        %s209 = scalar_lea.vmem [#allocation8], %s208
        // Predicated region
        $region41: #{tpu_custom_call.1} parent=31 // pred_check
          %p210 = pneg %p97
        $region42: #{tpu_custom_call.1} parent=31 // pred_check_branch
          %212 = sbr.rel (%p210) target = $region44
        $region43: #{tpu_custom_call.1} parent=31 // pred_region
          %213 = dma.done %s206, 512
        $region44: #{tpu_custom_call.1} parent=31 // pred_fallthru
          _
        %p214 = pneg %p45
        %p215 = pneg %p42
        %p216 = pneg %p71
        %p217 = pneg %p68
        %s218 = sand.u32 %s17, 1
        %s219 = scalar_lea.sflag [#allocation4], %s218
        %s220 = sand.u32 %s84, 1
        %s221 = smul.addr %s220, 32
        %s222 = scalar_lea.vmem [#allocation8], %s221
        %p223 = pneg %p97
        %p224 = pneg %p94
        %p225 = pneg %p123
        %p226 = pneg %p120
        %s227 = smul.u32 8, %s21
        %s228 = smul.u32 4, %s22
        %p229 = scmp.eq.s32.totalorder %s22, 0
        // Predicated region
        $region45: #{tpu_custom_call.1} parent=31 // pred_check
          %p230 = pneg %p229
        $region46: #{tpu_custom_call.1} parent=31 // pred_check_branch
          %232 = sbr.rel (%p230) target = $region48
        $region47: #{tpu_custom_call.1} parent=31 // pred_region
          %vm233 = vcmask 523264
          %234 = vst.msk [vmem:[#allocation2] sm:$0xff] %vm233, 0.0
        $region48: #{tpu_custom_call.1} parent=31 // pred_fallthru
          _
        %v235 = vld [vmem:[#allocation6] sm:$0xff]
        %v236 = vld [vmem:[#allocation6 + $0x8] sm:$0xff]
        %v237 = vld [vmem:[#allocation6 + $0x10] sm:$0xff]
        %v238 = vld [vmem:[#allocation6 + $0x18] sm:$0xff]
        %v239 = vld [vmem:[#allocation6 + $0x20] sm:$0xff]
        %v240 = vld [vmem:[#allocation6 + $0x28] sm:$0xff]
        %v241 = vld [vmem:[#allocation6 + $0x30] sm:$0xff]
        %v242 = vld [vmem:[#allocation6 + $0x38] sm:$0xff]
        %v243 = vld [vmem:[#allocation3] sm:$0xff]
        %v244 = vld [vmem:[#allocation2] sm:$0xff]
        %v245 = vld [vmem:[%s209] sm:$0xff]
        %v246 = vld [vmem:[%s209 + $0x8] sm:$0xff]
        %v249 = vcombine.high %v245, %v245
        %v251 = vunpack.c.l.s4 1966171168
        %v252 = vunpack.c.0.s8 %v251
        %v253 = vlaneseq
        %v254 = vshrl.u32 %v253, 7
        %v255 = vsub.s32 %v252, %v254
        %v256 = vrot.slane %v245, %v255
        %v258 = vunpack.c.l.s4 1966171168
        %v259 = vunpack.c.0.s8 %v258
        %v260 = vlaneseq
        %v261 = vshrl.u32 %v260, 7
        %v262 = vsub.s32 %v259, %v261
        %v263 = vrot.slane %v249, %v262
        %v264 = vcombine.high %v256, %v256
        %v265 = vcombine.high %v263, %v263
        %v267 = vunpack.c.l.s4 1966171168
        %v268 = vunpack.c.0.s8 %v267
        %v269 = vlaneseq
        %v270 = vshrl.u32 %v269, 7
        %v271 = vsub.s32 %v268, %v270
        %v272 = vrot.slane %v256, %v271
        %v274 = vunpack.c.l.s4 1966171168
        %v275 = vunpack.c.0.s8 %v274
        %v276 = vlaneseq
        %v277 = vshrl.u32 %v276, 7
        %v278 = vsub.s32 %v275, %v277
        %v279 = vrot.slane %v263, %v278
        %v281 = vunpack.c.l.s4 1966171168
        %v282 = vunpack.c.0.s8 %v281
        %v283 = vlaneseq
        %v284 = vshrl.u32 %v283, 7
        %v285 = vsub.s32 %v282, %v284
        %v286 = vrot.slane %v264, %v285
        %v288 = vunpack.c.l.s4 1966171168
        %v289 = vunpack.c.0.s8 %v288
        %v290 = vlaneseq
        %v291 = vshrl.u32 %v290, 7
        %v292 = vsub.s32 %v289, %v291
        %v293 = vrot.slane %v265, %v292
        %v294 = vcombine.high %v272, %v272
        %v295 = vcombine.high %v279, %v279
        %v296 = vcombine.high %v286, %v286
        %v297 = vcombine.high %v293, %v293
        %v298 = vcombine.high %v246, %v246
        %v300 = vunpack.c.l.s4 1966171168
        %v301 = vunpack.c.0.s8 %v300
        %v302 = vlaneseq
        %v303 = vshrl.u32 %v302, 7
        %v304 = vsub.s32 %v301, %v303
        %v305 = vrot.slane %v246, %v304
        %v307 = vunpack.c.l.s4 1966171168
        %v308 = vunpack.c.0.s8 %v307
        %v309 = vlaneseq
        %v310 = vshrl.u32 %v309, 7
        %v311 = vsub.s32 %v308, %v310
        %v312 = vrot.slane %v298, %v311
        %v313 = vcombine.high %v305, %v305
        %v314 = vcombine.high %v312, %v312
        %v316 = vunpack.c.l.s4 1966171168
        %v317 = vunpack.c.0.s8 %v316
        %v318 = vlaneseq
        %v319 = vshrl.u32 %v318, 7
        %v320 = vsub.s32 %v317, %v319
        %v321 = vrot.slane %v305, %v320
        %v323 = vunpack.c.l.s4 1966171168
        %v324 = vunpack.c.0.s8 %v323
        %v325 = vlaneseq
        %v326 = vshrl.u32 %v325, 7
        %v327 = vsub.s32 %v324, %v326
        %v328 = vrot.slane %v312, %v327
        %v330 = vunpack.c.l.s4 1966171168
        %v331 = vunpack.c.0.s8 %v330
        %v332 = vlaneseq
        %v333 = vshrl.u32 %v332, 7
        %v334 = vsub.s32 %v331, %v333
        %v335 = vrot.slane %v313, %v334
        %v337 = vunpack.c.l.s4 1966171168
        %v338 = vunpack.c.0.s8 %v337
        %v339 = vlaneseq
        %v340 = vshrl.u32 %v339, 7
        %v341 = vsub.s32 %v338, %v340
        %v342 = vrot.slane %v314, %v341
        %v343 = vcombine.high %v321, %v321
        %v344 = vcombine.high %v328, %v328
        %v345 = vcombine.high %v335, %v335
        %v346 = vcombine.high %v342, %v342
        %v347 = vlaneseq
        %v348 = vshrl.u32 %v347, 7
        %v349 = vsub.s32 0, %v348
        %v350 = vrot.slane %v272, %v349
        %v351 = vlaneseq
        %v352 = vshrl.u32 %v351, 7
        %v353 = vsub.s32 0, %v352
        %v354 = vrot.slane %v286, %v353
        %v355 = vlaneseq
        %v356 = vshrl.u32 %v355, 7
        %v357 = vsub.s32 0, %v356
        %v358 = vrot.slane %v294, %v357
        %v359 = vlaneseq
        %v360 = vshrl.u32 %v359, 7
        %v361 = vsub.s32 0, %v360
        %v362 = vrot.slane %v296, %v361
        %v363 = vlaneseq
        %v364 = vshrl.u32 %v363, 7
        %v365 = vsub.s32 0, %v364
        %v366 = vrot.slane %v279, %v365
        %v367 = vlaneseq
        %v368 = vshrl.u32 %v367, 7
        %v369 = vsub.s32 0, %v368
        %v370 = vrot.slane %v293, %v369
        %v371 = vlaneseq
        %v372 = vshrl.u32 %v371, 7
        %v373 = vsub.s32 0, %v372
        %v374 = vrot.slane %v295, %v373
        %v375 = vlaneseq
        %v376 = vshrl.u32 %v375, 7
        %v377 = vsub.s32 0, %v376
        %v378 = vrot.slane %v297, %v377
        %v379 = vlaneseq
        %v380 = vshrl.u32 %v379, 7
        %v381 = vsub.s32 0, %v380
        %v382 = vrot.slane %v321, %v381
        %v383 = vlaneseq
        %v384 = vshrl.u32 %v383, 7
        %v385 = vsub.s32 0, %v384
        %v386 = vrot.slane %v335, %v385
        %v387 = vlaneseq
        %v388 = vshrl.u32 %v387, 7
        %v389 = vsub.s32 0, %v388
        %v390 = vrot.slane %v343, %v389
        %v391 = vlaneseq
        %v392 = vshrl.u32 %v391, 7
        %v393 = vsub.s32 0, %v392
        %v394 = vrot.slane %v345, %v393
        %v395 = vlaneseq
        %v396 = vshrl.u32 %v395, 7
        %v397 = vsub.s32 0, %v396
        %v398 = vrot.slane %v328, %v397
        %v399 = vlaneseq
        %v400 = vshrl.u32 %v399, 7
        %v401 = vsub.s32 0, %v400
        %v402 = vrot.slane %v342, %v401
        %v403 = vlaneseq
        %v404 = vshrl.u32 %v403, 7
        %v405 = vsub.s32 0, %v404
        %v406 = vrot.slane %v344, %v405
        %v407 = vlaneseq
        %v408 = vshrl.u32 %v407, 7
        %v409 = vsub.s32 0, %v408
        %v410 = vrot.slane %v346, %v409
        %v427 = vsub.f32 %v350, %v235
        %v428 = vsub.f32 %v350, %v236
        %v429 = vsub.f32 %v350, %v237
        %v430 = vsub.f32 %v350, %v238
        %v431 = vsub.f32 %v350, %v239
        %v432 = vsub.f32 %v350, %v240
        %v433 = vsub.f32 %v350, %v241
        %v434 = vsub.f32 %v350, %v242
        %v435 = vsub.f32 %v354, %v235
        %v436 = vsub.f32 %v354, %v236
        %v437 = vsub.f32 %v354, %v237
        %v438 = vsub.f32 %v354, %v238
        %v439 = vsub.f32 %v354, %v239
        %v440 = vsub.f32 %v354, %v240
        %v441 = vsub.f32 %v354, %v241
        %v442 = vsub.f32 %v354, %v242
        %v443 = vsub.f32 %v358, %v235
        %v444 = vsub.f32 %v358, %v236
        %v445 = vsub.f32 %v358, %v237
        %v446 = vsub.f32 %v358, %v238
        %v447 = vsub.f32 %v358, %v239
        %v448 = vsub.f32 %v358, %v240
        %v449 = vsub.f32 %v358, %v241
        %v450 = vsub.f32 %v358, %v242
        %v451 = vsub.f32 %v362, %v235
        %v452 = vsub.f32 %v362, %v236
        %v453 = vsub.f32 %v362, %v237
        %v454 = vsub.f32 %v362, %v238
        %v455 = vsub.f32 %v362, %v239
        %v456 = vsub.f32 %v362, %v240
        %v457 = vsub.f32 %v362, %v241
        %v458 = vsub.f32 %v362, %v242
        %v459 = vsub.f32 %v366, %v235
        %v460 = vsub.f32 %v366, %v236
        %v461 = vsub.f32 %v366, %v237
        %v462 = vsub.f32 %v366, %v238
        %v463 = vsub.f32 %v366, %v239
        %v464 = vsub.f32 %v366, %v240
        %v465 = vsub.f32 %v366, %v241
        %v466 = vsub.f32 %v366, %v242
        %v467 = vsub.f32 %v370, %v235
        %v468 = vsub.f32 %v370, %v236
        %v469 = vsub.f32 %v370, %v237
        %v470 = vsub.f32 %v370, %v238
        %v471 = vsub.f32 %v370, %v239
        %v472 = vsub.f32 %v370, %v240
        %v473 = vsub.f32 %v370, %v241
        %v474 = vsub.f32 %v370, %v242
        %v475 = vsub.f32 %v374, %v235
        %v476 = vsub.f32 %v374, %v236
        %v477 = vsub.f32 %v374, %v237
        %v478 = vsub.f32 %v374, %v238
        %v479 = vsub.f32 %v374, %v239
        %v480 = vsub.f32 %v374, %v240
        %v481 = vsub.f32 %v374, %v241
        %v482 = vsub.f32 %v374, %v242
        %v483 = vsub.f32 %v378, %v235
        %v484 = vsub.f32 %v378, %v236
        %v485 = vsub.f32 %v378, %v237
        %v486 = vsub.f32 %v378, %v238
        %v487 = vsub.f32 %v378, %v239
        %v488 = vsub.f32 %v378, %v240
        %v489 = vsub.f32 %v378, %v241
        %v490 = vsub.f32 %v378, %v242
        %v491 = vsub.f32 %v382, %v235
        %v492 = vsub.f32 %v382, %v236
        %v493 = vsub.f32 %v382, %v237
        %v494 = vsub.f32 %v382, %v238
        %v495 = vsub.f32 %v382, %v239
        %v496 = vsub.f32 %v382, %v240
        %v497 = vsub.f32 %v382, %v241
        %v498 = vsub.f32 %v382, %v242
        %v499 = vsub.f32 %v386, %v235
        %v500 = vsub.f32 %v386, %v236
        %v501 = vsub.f32 %v386, %v237
        %v502 = vsub.f32 %v386, %v238
        %v503 = vsub.f32 %v386, %v239
        %v504 = vsub.f32 %v386, %v240
        %v505 = vsub.f32 %v386, %v241
        %v506 = vsub.f32 %v386, %v242
        %v507 = vsub.f32 %v390, %v235
        %v508 = vsub.f32 %v390, %v236
        %v509 = vsub.f32 %v390, %v237
        %v510 = vsub.f32 %v390, %v238
        %v511 = vsub.f32 %v390, %v239
        %v512 = vsub.f32 %v390, %v240
        %v513 = vsub.f32 %v390, %v241
        %v514 = vsub.f32 %v390, %v242
        %v515 = vsub.f32 %v394, %v235
        %v516 = vsub.f32 %v394, %v236
        %v517 = vsub.f32 %v394, %v237
        %v518 = vsub.f32 %v394, %v238
        %v519 = vsub.f32 %v394, %v239
        %v520 = vsub.f32 %v394, %v240
        %v521 = vsub.f32 %v394, %v241
        %v522 = vsub.f32 %v394, %v242
        %v523 = vsub.f32 %v398, %v235
        %v524 = vsub.f32 %v398, %v236
        %v525 = vsub.f32 %v398, %v237
        %v526 = vsub.f32 %v398, %v238
        %v527 = vsub.f32 %v398, %v239
        %v528 = vsub.f32 %v398, %v240
        %v529 = vsub.f32 %v398, %v241
        %v530 = vsub.f32 %v398, %v242
        %v531 = vsub.f32 %v402, %v235
        %v532 = vsub.f32 %v402, %v236
        %v533 = vsub.f32 %v402, %v237
        %v534 = vsub.f32 %v402, %v238
        %v535 = vsub.f32 %v402, %v239
        %v536 = vsub.f32 %v402, %v240
        %v537 = vsub.f32 %v402, %v241
        %v538 = vsub.f32 %v402, %v242
        %v539 = vsub.f32 %v406, %v235
        %v540 = vsub.f32 %v406, %v236
        %v541 = vsub.f32 %v406, %v237
        %v542 = vsub.f32 %v406, %v238
        %v543 = vsub.f32 %v406, %v239
        %v544 = vsub.f32 %v406, %v240
        %v545 = vsub.f32 %v406, %v241
        %v546 = vsub.f32 %v406, %v242
        %v547 = vsub.f32 %v410, %v235
        %v548 = vsub.f32 %v410, %v236
        %v549 = vsub.f32 %v410, %v237
        %v550 = vsub.f32 %v410, %v238
        %v551 = vsub.f32 %v410, %v239
        %v552 = vsub.f32 %v410, %v240
        %v553 = vsub.f32 %v410, %v241
        %v554 = vsub.f32 %v410, %v242
        %v555 = vand.u32 2147483647, %v427
        %v556 = vand.u32 2147483647, %v428
        %v557 = vand.u32 2147483647, %v429
        %v558 = vand.u32 2147483647, %v430
        %v559 = vand.u32 2147483647, %v431
        %v560 = vand.u32 2147483647, %v432
        %v561 = vand.u32 2147483647, %v433
        %v562 = vand.u32 2147483647, %v434
        %v563 = vand.u32 2147483647, %v435
        %v564 = vand.u32 2147483647, %v436
        %v565 = vand.u32 2147483647, %v437
        %v566 = vand.u32 2147483647, %v438
        %v567 = vand.u32 2147483647, %v439
        %v568 = vand.u32 2147483647, %v440
        %v569 = vand.u32 2147483647, %v441
        %v570 = vand.u32 2147483647, %v442
        %v571 = vand.u32 2147483647, %v443
        %v572 = vand.u32 2147483647, %v444
        %v573 = vand.u32 2147483647, %v445
        %v574 = vand.u32 2147483647, %v446
        %v575 = vand.u32 2147483647, %v447
        %v576 = vand.u32 2147483647, %v448
        %v577 = vand.u32 2147483647, %v449
        %v578 = vand.u32 2147483647, %v450
        %v579 = vand.u32 2147483647, %v451
        %v580 = vand.u32 2147483647, %v452
        %v581 = vand.u32 2147483647, %v453
        %v582 = vand.u32 2147483647, %v454
        %v583 = vand.u32 2147483647, %v455
        %v584 = vand.u32 2147483647, %v456
        %v585 = vand.u32 2147483647, %v457
        %v586 = vand.u32 2147483647, %v458
        %v587 = vand.u32 2147483647, %v459
        %v588 = vand.u32 2147483647, %v460
        %v589 = vand.u32 2147483647, %v461
        %v590 = vand.u32 2147483647, %v462
        %v591 = vand.u32 2147483647, %v463
        %v592 = vand.u32 2147483647, %v464
        %v593 = vand.u32 2147483647, %v465
        %v594 = vand.u32 2147483647, %v466
        %v595 = vand.u32 2147483647, %v467
        %v596 = vand.u32 2147483647, %v468
        %v597 = vand.u32 2147483647, %v469
        %v598 = vand.u32 2147483647, %v470
        %v599 = vand.u32 2147483647, %v471
        %v600 = vand.u32 2147483647, %v472
        %v601 = vand.u32 2147483647, %v473
        %v602 = vand.u32 2147483647, %v474
        %v603 = vand.u32 2147483647, %v475
        %v604 = vand.u32 2147483647, %v476
        %v605 = vand.u32 2147483647, %v477
        %v606 = vand.u32 2147483647, %v478
        %v607 = vand.u32 2147483647, %v479
        %v608 = vand.u32 2147483647, %v480
        %v609 = vand.u32 2147483647, %v481
        %v610 = vand.u32 2147483647, %v482
        %v611 = vand.u32 2147483647, %v483
        %v612 = vand.u32 2147483647, %v484
        %v613 = vand.u32 2147483647, %v485
        %v614 = vand.u32 2147483647, %v486
        %v615 = vand.u32 2147483647, %v487
        %v616 = vand.u32 2147483647, %v488
        %v617 = vand.u32 2147483647, %v489
        %v618 = vand.u32 2147483647, %v490
        %v619 = vand.u32 2147483647, %v491
        %v620 = vand.u32 2147483647, %v492
        %v621 = vand.u32 2147483647, %v493
        %v622 = vand.u32 2147483647, %v494
        %v623 = vand.u32 2147483647, %v495
        %v624 = vand.u32 2147483647, %v496
        %v625 = vand.u32 2147483647, %v497
        %v626 = vand.u32 2147483647, %v498
        %v627 = vand.u32 2147483647, %v499
        %v628 = vand.u32 2147483647, %v500
        %v629 = vand.u32 2147483647, %v501
        %v630 = vand.u32 2147483647, %v502
        %v631 = vand.u32 2147483647, %v503
        %v632 = vand.u32 2147483647, %v504
        %v633 = vand.u32 2147483647, %v505
        %v634 = vand.u32 2147483647, %v506
        %v635 = vand.u32 2147483647, %v507
        %v636 = vand.u32 2147483647, %v508
        %v637 = vand.u32 2147483647, %v509
        %v638 = vand.u32 2147483647, %v510
        %v639 = vand.u32 2147483647, %v511
        %v640 = vand.u32 2147483647, %v512
        %v641 = vand.u32 2147483647, %v513
        %v642 = vand.u32 2147483647, %v514
        %v643 = vand.u32 2147483647, %v515
        %v644 = vand.u32 2147483647, %v516
        %v645 = vand.u32 2147483647, %v517
        %v646 = vand.u32 2147483647, %v518
        %v647 = vand.u32 2147483647, %v519
        %v648 = vand.u32 2147483647, %v520
        %v649 = vand.u32 2147483647, %v521
        %v650 = vand.u32 2147483647, %v522
        %v651 = vand.u32 2147483647, %v523
        %v652 = vand.u32 2147483647, %v524
        %v653 = vand.u32 2147483647, %v525
        %v654 = vand.u32 2147483647, %v526
        %v655 = vand.u32 2147483647, %v527
        %v656 = vand.u32 2147483647, %v528
        %v657 = vand.u32 2147483647, %v529
        %v658 = vand.u32 2147483647, %v530
        %v659 = vand.u32 2147483647, %v531
        %v660 = vand.u32 2147483647, %v532
        %v661 = vand.u32 2147483647, %v533
        %v662 = vand.u32 2147483647, %v534
        %v663 = vand.u32 2147483647, %v535
        %v664 = vand.u32 2147483647, %v536
        %v665 = vand.u32 2147483647, %v537
        %v666 = vand.u32 2147483647, %v538
        %v667 = vand.u32 2147483647, %v539
        %v668 = vand.u32 2147483647, %v540
        %v669 = vand.u32 2147483647, %v541
        %v670 = vand.u32 2147483647, %v542
        %v671 = vand.u32 2147483647, %v543
        %v672 = vand.u32 2147483647, %v544
        %v673 = vand.u32 2147483647, %v545
        %v674 = vand.u32 2147483647, %v546
        %v675 = vand.u32 2147483647, %v547
        %v676 = vand.u32 2147483647, %v548
        %v677 = vand.u32 2147483647, %v549
        %v678 = vand.u32 2147483647, %v550
        %v679 = vand.u32 2147483647, %v551
        %v680 = vand.u32 2147483647, %v552
        %v681 = vand.u32 2147483647, %v553
        %v682 = vand.u32 2147483647, %v554
        %683 = vmatprep.subr.mxu0 0.0
        %684 = vmatpush1.xpose.msra.mxu0 %v555
        %685 = vmatprep.subr.mxu0 0.0
        %686 = vmatpush1.xpose.msra.mxu0 %v556
        %687 = vmatprep.subr.mxu0 0.0
        %688 = vmatpush1.xpose.msra.mxu0 %v557
        %689 = vmatprep.subr.mxu0 0.0
        %690 = vmatpush1.xpose.msra.mxu0 %v558
        %691 = vmatprep.subr.mxu0 0.0
        %692 = vmatpush1.xpose.msra.mxu0 %v559
        %693 = vmatprep.subr.mxu0 0.0
        %694 = vmatpush1.xpose.msra.mxu0 %v560
        %695 = vmatprep.subr.mxu0 0.0
        %696 = vmatpush1.xpose.msra.mxu0 %v561
        %697 = vmatprep.subr.mxu0 0.0
        %698 = vmatpush1.xpose.msra.mxu0 %v562
        %699 = vmatprep.subr.mxu0 0.0
        %700 = vmatpush1.xpose.msra.mxu0 %v563
        %701 = vmatprep.subr.mxu0 0.0
        %702 = vmatpush1.xpose.msra.mxu0 %v564
        %703 = vmatprep.subr.mxu0 0.0
        %704 = vmatpush1.xpose.msra.mxu0 %v565
        %705 = vmatprep.subr.mxu0 0.0
        %706 = vmatpush1.xpose.msra.mxu0 %v566
        %707 = vmatprep.subr.mxu0 0.0
        %708 = vmatpush1.xpose.msra.mxu0 %v567
        %709 = vmatprep.subr.mxu0 0.0
        %710 = vmatpush1.xpose.msra.mxu0 %v568
        %711 = vmatprep.subr.mxu0 0.0
        %712 = vmatpush1.xpose.msra.mxu0 %v569
        %713 = vmatprep.subr.mxu0 0.0
        %714 = vmatpush1.xpose.msra.mxu0 %v570
        %715 = vmatprep.subr.mxu0 0.0
        %716 = vmatpush1.xpose.msra.mxu0 %v571
        %717 = vmatprep.subr.mxu0 0.0
        %718 = vmatpush1.xpose.msra.mxu0 %v572
        %719 = vmatprep.subr.mxu0 0.0
        %720 = vmatpush1.xpose.msra.mxu0 %v573
        %721 = vmatprep.subr.mxu0 0.0
        %722 = vmatpush1.xpose.msra.mxu0 %v574
        %723 = vmatprep.subr.mxu0 0.0
        %724 = vmatpush1.xpose.msra.mxu0 %v575
        %725 = vmatprep.subr.mxu0 0.0
        %726 = vmatpush1.xpose.msra.mxu0 %v576
        %727 = vmatprep.subr.mxu0 0.0
        %728 = vmatpush1.xpose.msra.mxu0 %v577
        %729 = vmatprep.subr.mxu0 0.0
        %730 = vmatpush1.xpose.msra.mxu0 %v578
        %731 = vmatprep.subr.mxu0 0.0
        %732 = vmatpush1.xpose.msra.mxu0 %v579
        %733 = vmatprep.subr.mxu0 0.0
        %734 = vmatpush1.xpose.msra.mxu0 %v580
        %735 = vmatprep.subr.mxu0 0.0
        %736 = vmatpush1.xpose.msra.mxu0 %v581
        %737 = vmatprep.subr.mxu0 0.0
        %738 = vmatpush1.xpose.msra.mxu0 %v582
        %739 = vmatprep.subr.mxu0 0.0
        %740 = vmatpush1.xpose.msra.mxu0 %v583
        %741 = vmatprep.subr.mxu0 0.0
        %742 = vmatpush1.xpose.msra.mxu0 %v584
        %743 = vmatprep.subr.mxu0 0.0
        %744 = vmatpush1.xpose.msra.mxu0 %v585
        %745 = vmatprep.subr.mxu0 0.0
        %746 = vmatpush1.xpose.msra.mxu0 %v586
        %747 = vmatprep.mubr.f32.mxu0 0.0
        %748 = vmatmul.mubr.f32.gmra.mrb[0].mxu0 %v243
        %v749 = vpop.f32.mrb[0].mxu0
        %v750 = vadd.f32 0.0, %v749
        %v751 = vpop.f32.mrb[0].mxu0
        %v752 = vadd.f32 0.0, %v751
        %753 = vdwg.mxu0
        %754 = vmatprep.subr.mxu0 0.0
        %755 = vmatpush1.xpose.msra.mxu0 %v587
        %756 = vmatprep.subr.mxu0 0.0
        %757 = vmatpush1.xpose.msra.mxu0 %v588
        %758 = vmatprep.subr.mxu0 0.0
        %759 = vmatpush1.xpose.msra.mxu0 %v589
        %760 = vmatprep.subr.mxu0 0.0
        %761 = vmatpush1.xpose.msra.mxu0 %v590
        %762 = vmatprep.subr.mxu0 0.0
        %763 = vmatpush1.xpose.msra.mxu0 %v591
        %764 = vmatprep.subr.mxu0 0.0
        %765 = vmatpush1.xpose.msra.mxu0 %v592
        %766 = vmatprep.subr.mxu0 0.0
        %767 = vmatpush1.xpose.msra.mxu0 %v593
        %768 = vmatprep.subr.mxu0 0.0
        %769 = vmatpush1.xpose.msra.mxu0 %v594
        %770 = vmatprep.subr.mxu0 0.0
        %771 = vmatpush1.xpose.msra.mxu0 %v595
        %772 = vmatprep.subr.mxu0 0.0
        %773 = vmatpush1.xpose.msra.mxu0 %v596
        %774 = vmatprep.subr.mxu0 0.0
        %775 = vmatpush1.xpose.msra.mxu0 %v597
        %776 = vmatprep.subr.mxu0 0.0
        %777 = vmatpush1.xpose.msra.mxu0 %v598
        %778 = vmatprep.subr.mxu0 0.0
        %779 = vmatpush1.xpose.msra.mxu0 %v599
        %780 = vmatprep.subr.mxu0 0.0
        %781 = vmatpush1.xpose.msra.mxu0 %v600
        %782 = vmatprep.subr.mxu0 0.0
        %783 = vmatpush1.xpose.msra.mxu0 %v601
        %784 = vmatprep.subr.mxu0 0.0
        %785 = vmatpush1.xpose.msra.mxu0 %v602
        %786 = vmatprep.subr.mxu0 0.0
        %787 = vmatpush1.xpose.msra.mxu0 %v603
        %788 = vmatprep.subr.mxu0 0.0
        %789 = vmatpush1.xpose.msra.mxu0 %v604
        %790 = vmatprep.subr.mxu0 0.0
        %791 = vmatpush1.xpose.msra.mxu0 %v605
        %792 = vmatprep.subr.mxu0 0.0
        %793 = vmatpush1.xpose.msra.mxu0 %v606
        %794 = vmatprep.subr.mxu0 0.0
        %795 = vmatpush1.xpose.msra.mxu0 %v607
        %796 = vmatprep.subr.mxu0 0.0
        %797 = vmatpush1.xpose.msra.mxu0 %v608
        %798 = vmatprep.subr.mxu0 0.0
        %799 = vmatpush1.xpose.msra.mxu0 %v609
        %800 = vmatprep.subr.mxu0 0.0
        %801 = vmatpush1.xpose.msra.mxu0 %v610
        %802 = vmatprep.subr.mxu0 0.0
        %803 = vmatpush1.xpose.msra.mxu0 %v611
        %804 = vmatprep.subr.mxu0 0.0
        %805 = vmatpush1.xpose.msra.mxu0 %v612
        %806 = vmatprep.subr.mxu0 0.0
        %807 = vmatpush1.xpose.msra.mxu0 %v613
        %808 = vmatprep.subr.mxu0 0.0
        %809 = vmatpush1.xpose.msra.mxu0 %v614
        %810 = vmatprep.subr.mxu0 0.0
        %811 = vmatpush1.xpose.msra.mxu0 %v615
        %812 = vmatprep.subr.mxu0 0.0
        %813 = vmatpush1.xpose.msra.mxu0 %v616
        %814 = vmatprep.subr.mxu0 0.0
        %815 = vmatpush1.xpose.msra.mxu0 %v617
        %816 = vmatprep.subr.mxu0 0.0
        %817 = vmatpush1.xpose.msra.mxu0 %v618
        %818 = vmatprep.mubr.f32.mxu0 0.0
        %819 = vmatmul.mubr.f32.gmra.mrb[0].mxu0 %v243
        %v820 = vpop.f32.mrb[0].mxu0
        %v821 = vadd.f32 0.0, %v820
        %v822 = vpop.f32.mrb[0].mxu0
        %v823 = vadd.f32 0.0, %v822
        %824 = vdwg.mxu0
        %825 = vmatprep.subr.mxu0 0.0
        %826 = vmatpush1.xpose.msra.mxu0 %v619
        %827 = vmatprep.subr.mxu0 0.0
        %828 = vmatpush1.xpose.msra.mxu0 %v620
        %829 = vmatprep.subr.mxu0 0.0
        %830 = vmatpush1.xpose.msra.mxu0 %v621
        %831 = vmatprep.subr.mxu0 0.0
        %832 = vmatpush1.xpose.msra.mxu0 %v622
        %833 = vmatprep.subr.mxu0 0.0
        %834 = vmatpush1.xpose.msra.mxu0 %v623
        %835 = vmatprep.subr.mxu0 0.0
        %836 = vmatpush1.xpose.msra.mxu0 %v624
        %837 = vmatprep.subr.mxu0 0.0
        %838 = vmatpush1.xpose.msra.mxu0 %v625
        %839 = vmatprep.subr.mxu0 0.0
        %840 = vmatpush1.xpose.msra.mxu0 %v626
        %841 = vmatprep.subr.mxu0 0.0
        %842 = vmatpush1.xpose.msra.mxu0 %v627
        %843 = vmatprep.subr.mxu0 0.0
        %844 = vmatpush1.xpose.msra.mxu0 %v628
        %845 = vmatprep.subr.mxu0 0.0
        %846 = vmatpush1.xpose.msra.mxu0 %v629
        %847 = vmatprep.subr.mxu0 0.0
        %848 = vmatpush1.xpose.msra.mxu0 %v630
        %849 = vmatprep.subr.mxu0 0.0
        %850 = vmatpush1.xpose.msra.mxu0 %v631
        %851 = vmatprep.subr.mxu0 0.0
        %852 = vmatpush1.xpose.msra.mxu0 %v632
        %853 = vmatprep.subr.mxu0 0.0
        %854 = vmatpush1.xpose.msra.mxu0 %v633
        %855 = vmatprep.subr.mxu0 0.0
        %856 = vmatpush1.xpose.msra.mxu0 %v634
        %857 = vmatprep.subr.mxu0 0.0
        %858 = vmatpush1.xpose.msra.mxu0 %v635
        %859 = vmatprep.subr.mxu0 0.0
        %860 = vmatpush1.xpose.msra.mxu0 %v636
        %861 = vmatprep.subr.mxu0 0.0
        %862 = vmatpush1.xpose.msra.mxu0 %v637
        %863 = vmatprep.subr.mxu0 0.0
        %864 = vmatpush1.xpose.msra.mxu0 %v638
        %865 = vmatprep.subr.mxu0 0.0
        %866 = vmatpush1.xpose.msra.mxu0 %v639
        %867 = vmatprep.subr.mxu0 0.0
        %868 = vmatpush1.xpose.msra.mxu0 %v640
        %869 = vmatprep.subr.mxu0 0.0
        %870 = vmatpush1.xpose.msra.mxu0 %v641
        %871 = vmatprep.subr.mxu0 0.0
        %872 = vmatpush1.xpose.msra.mxu0 %v642
        %873 = vmatprep.subr.mxu0 0.0
        %874 = vmatpush1.xpose.msra.mxu0 %v643
        %875 = vmatprep.subr.mxu0 0.0
        %876 = vmatpush1.xpose.msra.mxu0 %v644
        %877 = vmatprep.subr.mxu0 0.0
        %878 = vmatpush1.xpose.msra.mxu0 %v645
        %879 = vmatprep.subr.mxu0 0.0
        %880 = vmatpush1.xpose.msra.mxu0 %v646
        %881 = vmatprep.subr.mxu0 0.0
        %882 = vmatpush1.xpose.msra.mxu0 %v647
        %883 = vmatprep.subr.mxu0 0.0
        %884 = vmatpush1.xpose.msra.mxu0 %v648
        %885 = vmatprep.subr.mxu0 0.0
        %886 = vmatpush1.xpose.msra.mxu0 %v649
        %887 = vmatprep.subr.mxu0 0.0
        %888 = vmatpush1.xpose.msra.mxu0 %v650
        %889 = vmatprep.mubr.f32.mxu0 0.0
        %890 = vmatmul.mubr.f32.gmra.mrb[0].mxu0 %v243
        %v891 = vpop.f32.mrb[0].mxu0
        %v892 = vadd.f32 0.0, %v891
        %v893 = vpop.f32.mrb[0].mxu0
        %v894 = vadd.f32 0.0, %v893
        %895 = vdwg.mxu0
        %896 = vmatprep.subr.mxu0 0.0
        %897 = vmatpush1.xpose.msra.mxu0 %v651
        %898 = vmatprep.subr.mxu0 0.0
        %899 = vmatpush1.xpose.msra.mxu0 %v652
        %900 = vmatprep.subr.mxu0 0.0
        %901 = vmatpush1.xpose.msra.mxu0 %v653
        %902 = vmatprep.subr.mxu0 0.0
        %903 = vmatpush1.xpose.msra.mxu0 %v654
        %904 = vmatprep.subr.mxu0 0.0
        %905 = vmatpush1.xpose.msra.mxu0 %v655
        %906 = vmatprep.subr.mxu0 0.0
        %907 = vmatpush1.xpose.msra.mxu0 %v656
        %908 = vmatprep.subr.mxu0 0.0
        %909 = vmatpush1.xpose.msra.mxu0 %v657
        %910 = vmatprep.subr.mxu0 0.0
        %911 = vmatpush1.xpose.msra.mxu0 %v658
        %912 = vmatprep.subr.mxu0 0.0
        %913 = vmatpush1.xpose.msra.mxu0 %v659
        %914 = vmatprep.subr.mxu0 0.0
        %915 = vmatpush1.xpose.msra.mxu0 %v660
        %916 = vmatprep.subr.mxu0 0.0
        %917 = vmatpush1.xpose.msra.mxu0 %v661
        %918 = vmatprep.subr.mxu0 0.0
        %919 = vmatpush1.xpose.msra.mxu0 %v662
        %920 = vmatprep.subr.mxu0 0.0
        %921 = vmatpush1.xpose.msra.mxu0 %v663
        %922 = vmatprep.subr.mxu0 0.0
        %923 = vmatpush1.xpose.msra.mxu0 %v664
        %924 = vmatprep.subr.mxu0 0.0
        %925 = vmatpush1.xpose.msra.mxu0 %v665
        %926 = vmatprep.subr.mxu0 0.0
        %927 = vmatpush1.xpose.msra.mxu0 %v666
        %928 = vmatprep.subr.mxu0 0.0
        %929 = vmatpush1.xpose.msra.mxu0 %v667
        %930 = vmatprep.subr.mxu0 0.0
        %931 = vmatpush1.xpose.msra.mxu0 %v668
        %932 = vmatprep.subr.mxu0 0.0
        %933 = vmatpush1.xpose.msra.mxu0 %v669
        %934 = vmatprep.subr.mxu0 0.0
        %935 = vmatpush1.xpose.msra.mxu0 %v670
        %936 = vmatprep.subr.mxu0 0.0
        %937 = vmatpush1.xpose.msra.mxu0 %v671
        %938 = vmatprep.subr.mxu0 0.0
        %939 = vmatpush1.xpose.msra.mxu0 %v672
        %940 = vmatprep.subr.mxu0 0.0
        %941 = vmatpush1.xpose.msra.mxu0 %v673
        %942 = vmatprep.subr.mxu0 0.0
        %943 = vmatpush1.xpose.msra.mxu0 %v674
        %944 = vmatprep.subr.mxu0 0.0
        %945 = vmatpush1.xpose.msra.mxu0 %v675
        %946 = vmatprep.subr.mxu0 0.0
        %947 = vmatpush1.xpose.msra.mxu0 %v676
        %948 = vmatprep.subr.mxu0 0.0
        %949 = vmatpush1.xpose.msra.mxu0 %v677
        %950 = vmatprep.subr.mxu0 0.0
        %951 = vmatpush1.xpose.msra.mxu0 %v678
        %952 = vmatprep.subr.mxu0 0.0
        %953 = vmatpush1.xpose.msra.mxu0 %v679
        %954 = vmatprep.subr.mxu0 0.0
        %955 = vmatpush1.xpose.msra.mxu0 %v680
        %956 = vmatprep.subr.mxu0 0.0
        %957 = vmatpush1.xpose.msra.mxu0 %v681
        %958 = vmatprep.subr.mxu0 0.0
        %959 = vmatpush1.xpose.msra.mxu0 %v682
        %960 = vmatprep.mubr.f32.mxu0 0.0
        %961 = vmatmul.mubr.f32.gmra.mrb[0].mxu0 %v243
        %v962 = vpop.f32.mrb[0].mxu0
        %v963 = vadd.f32 0.0, %v962
        %v964 = vpop.f32.mrb[0].mxu0
        %v965 = vadd.f32 0.0, %v964
        %966 = vdwg.mxu0
        %v967 = vsub.f32 0.0, %v750
        %v968 = vsub.f32 0.0, %v752
        %v969 = vsub.f32 0.0, %v821
        %v970 = vsub.f32 0.0, %v823
        %v971 = vsub.f32 0.0, %v892
        %v972 = vsub.f32 0.0, %v894
        %v973 = vsub.f32 0.0, %v963
        %v974 = vsub.f32 0.0, %v965
        %v975 = vmul.f32 %v967, 1.442695
        %v976 = vpow.pop %v975
        %v977 = vmul.f32 %v968, 1.442695
        %v978 = vpow.pop %v977
        %v979 = vmul.f32 %v969, 1.442695
        %v980 = vpow.pop %v979
        %v981 = vmul.f32 %v970, 1.442695
        %v982 = vpow.pop %v981
        %v983 = vmul.f32 %v971, 1.442695
        %v984 = vpow.pop %v983
        %v985 = vmul.f32 %v972, 1.442695
        %v986 = vpow.pop %v985
        %v987 = vmul.f32 %v973, 1.442695
        %v988 = vpow.pop %v987
        %v989 = vmul.f32 %v974, 1.442695
        %v990 = vpow.pop %v989
        %992 = vrot.lane.b32.xlu0 %v976, 64
        %v993 = vpop.permute.xlu0 %992
        %996 = vrot.lane.b32.xlu0 %v978, 64
        %v997 = vpop.permute.xlu0 %996
        %1000 = vrot.lane.b32.xlu0 %v980, 64
        %v1001 = vpop.permute.xlu0 %1000
        %1004 = vrot.lane.b32.xlu0 %v982, 64
        %v1005 = vpop.permute.xlu0 %1004
        %1008 = vrot.lane.b32.xlu0 %v984, 64
        %v1009 = vpop.permute.xlu0 %1008
        %1012 = vrot.lane.b32.xlu0 %v986, 64
        %v1013 = vpop.permute.xlu0 %1012
        %1016 = vrot.lane.b32.xlu0 %v988, 64
        %v1017 = vpop.permute.xlu0 %1016
        %1020 = vrot.lane.b32.xlu0 %v990, 64
        %v1021 = vpop.permute.xlu0 %1020
        %v1023 = vcombine.low %v976, %v978
        %v1024 = vcombine.high %v976, %v978
        %v1026 = vunpack.c.l.s4 1983009808
        %v1027 = vunpack.c.0.s8 %v1026
        %v1028 = vlaneseq
        %v1029 = vshrl.u32 %v1028, 7
        %v1030 = vsub.s32 %v1027, %v1029
        %v1031 = vrot.slane %v1023, %v1030
        %v1033 = vunpack.c.l.s4 1983009808
        %v1034 = vunpack.c.0.s8 %v1033
        %v1035 = vlaneseq
        %v1036 = vshrl.u32 %v1035, 7
        %v1037 = vsub.s32 %v1034, %v1036
        %v1038 = vrot.slane %v1024, %v1037
        %v1039 = vcombine.low %v993, %v997
        %v1040 = vcombine.high %v993, %v997
        %v1042 = vunpack.c.l.s4 1983009808
        %v1043 = vunpack.c.0.s8 %v1042
        %v1044 = vlaneseq
        %v1045 = vshrl.u32 %v1044, 7
        %v1046 = vsub.s32 %v1043, %v1045
        %v1047 = vrot.slane %v1039, %v1046
        %v1049 = vunpack.c.l.s4 1983009808
        %v1050 = vunpack.c.0.s8 %v1049
        %v1051 = vlaneseq
        %v1052 = vshrl.u32 %v1051, 7
        %v1053 = vsub.s32 %v1050, %v1052
        %v1054 = vrot.slane %v1040, %v1053
        %v1055 = vcombine.low %v980, %v982
        %v1056 = vcombine.high %v980, %v982
        %v1058 = vunpack.c.l.s4 1983009808
        %v1059 = vunpack.c.0.s8 %v1058
        %v1060 = vlaneseq
        %v1061 = vshrl.u32 %v1060, 7
        %v1062 = vsub.s32 %v1059, %v1061
        %v1063 = vrot.slane %v1055, %v1062
        %v1065 = vunpack.c.l.s4 1983009808
        %v1066 = vunpack.c.0.s8 %v1065
        %v1067 = vlaneseq
        %v1068 = vshrl.u32 %v1067, 7
        %v1069 = vsub.s32 %v1066, %v1068
        %v1070 = vrot.slane %v1056, %v1069
        %v1071 = vcombine.low %v1001, %v1005
        %v1072 = vcombine.high %v1001, %v1005
        %v1074 = vunpack.c.l.s4 1983009808
        %v1075 = vunpack.c.0.s8 %v1074
        %v1076 = vlaneseq
        %v1077 = vshrl.u32 %v1076, 7
        %v1078 = vsub.s32 %v1075, %v1077
        %v1079 = vrot.slane %v1071, %v1078
        %v1081 = vunpack.c.l.s4 1983009808
        %v1082 = vunpack.c.0.s8 %v1081
        %v1083 = vlaneseq
        %v1084 = vshrl.u32 %v1083, 7
        %v1085 = vsub.s32 %v1082, %v1084
        %v1086 = vrot.slane %v1072, %v1085
        %v1087 = vcombine.low %v1031, %v1047
        %v1088 = vcombine.high %v1031, %v1047
        %v1090 = vunpack.c.l.s4 1934713408
        %v1091 = vunpack.c.0.s8 %v1090
        %v1092 = vlaneseq
        %v1093 = vshrl.u32 %v1092, 7
        %v1094 = vsub.s32 %v1091, %v1093
        %v1095 = vrot.slane %v1087, %v1094
        %v1097 = vunpack.c.l.s4 1934713408
        %v1098 = vunpack.c.0.s8 %v1097
        %v1099 = vlaneseq
        %v1100 = vshrl.u32 %v1099, 7
        %v1101 = vsub.s32 %v1098, %v1100
        %v1102 = vrot.slane %v1088, %v1101
        %v1103 = vcombine.low %v1038, %v1054
        %v1104 = vcombine.high %v1038, %v1054
        %v1106 = vunpack.c.l.s4 1934713408
        %v1107 = vunpack.c.0.s8 %v1106
        %v1108 = vlaneseq
        %v1109 = vshrl.u32 %v1108, 7
        %v1110 = vsub.s32 %v1107, %v1109
        %v1111 = vrot.slane %v1103, %v1110
        %v1113 = vunpack.c.l.s4 1934713408
        %v1114 = vunpack.c.0.s8 %v1113
        %v1115 = vlaneseq
        %v1116 = vshrl.u32 %v1115, 7
        %v1117 = vsub.s32 %v1114, %v1116
        %v1118 = vrot.slane %v1104, %v1117
        %v1119 = vcombine.low %v1063, %v1079
        %v1120 = vcombine.high %v1063, %v1079
        %v1122 = vunpack.c.l.s4 1934713408
        %v1123 = vunpack.c.0.s8 %v1122
        %v1124 = vlaneseq
        %v1125 = vshrl.u32 %v1124, 7
        %v1126 = vsub.s32 %v1123, %v1125
        %v1127 = vrot.slane %v1119, %v1126
        %v1129 = vunpack.c.l.s4 1934713408
        %v1130 = vunpack.c.0.s8 %v1129
        %v1131 = vlaneseq
        %v1132 = vshrl.u32 %v1131, 7
        %v1133 = vsub.s32 %v1130, %v1132
        %v1134 = vrot.slane %v1120, %v1133
        %v1135 = vcombine.low %v1070, %v1086
        %v1136 = vcombine.high %v1070, %v1086
        %v1138 = vunpack.c.l.s4 1934713408
        %v1139 = vunpack.c.0.s8 %v1138
        %v1140 = vlaneseq
        %v1141 = vshrl.u32 %v1140, 7
        %v1142 = vsub.s32 %v1139, %v1141
        %v1143 = vrot.slane %v1135, %v1142
        %v1145 = vunpack.c.l.s4 1934713408
        %v1146 = vunpack.c.0.s8 %v1145
        %v1147 = vlaneseq
        %v1148 = vshrl.u32 %v1147, 7
        %v1149 = vsub.s32 %v1146, %v1148
        %v1150 = vrot.slane %v1136, %v1149
        %v1151 = vcombine.low %v1095, %v1127
        %v1152 = vcombine.high %v1095, %v1127
        %v1153 = vcombine.low %v1102, %v1134
        %v1154 = vcombine.high %v1102, %v1134
        %v1155 = vcombine.low %v1111, %v1143
        %v1156 = vcombine.high %v1111, %v1143
        %v1157 = vcombine.low %v1118, %v1150
        %v1158 = vcombine.high %v1118, %v1150
        %v1159 = vcombine.low %v984, %v986
        %v1160 = vcombine.high %v984, %v986
        %v1162 = vunpack.c.l.s4 1983009808
        %v1163 = vunpack.c.0.s8 %v1162
        %v1164 = vlaneseq
        %v1165 = vshrl.u32 %v1164, 7
        %v1166 = vsub.s32 %v1163, %v1165
        %v1167 = vrot.slane %v1159, %v1166
        %v1169 = vunpack.c.l.s4 1983009808
        %v1170 = vunpack.c.0.s8 %v1169
        %v1171 = vlaneseq
        %v1172 = vshrl.u32 %v1171, 7
        %v1173 = vsub.s32 %v1170, %v1172
        %v1174 = vrot.slane %v1160, %v1173
        %v1175 = vcombine.low %v1009, %v1013
        %v1176 = vcombine.high %v1009, %v1013
        %v1178 = vunpack.c.l.s4 1983009808
        %v1179 = vunpack.c.0.s8 %v1178
        %v1180 = vlaneseq
        %v1181 = vshrl.u32 %v1180, 7
        %v1182 = vsub.s32 %v1179, %v1181
        %v1183 = vrot.slane %v1175, %v1182
        %v1185 = vunpack.c.l.s4 1983009808
        %v1186 = vunpack.c.0.s8 %v1185
        %v1187 = vlaneseq
        %v1188 = vshrl.u32 %v1187, 7
        %v1189 = vsub.s32 %v1186, %v1188
        %v1190 = vrot.slane %v1176, %v1189
        %v1191 = vcombine.low %v988, %v990
        %v1192 = vcombine.high %v988, %v990
        %v1194 = vunpack.c.l.s4 1983009808
        %v1195 = vunpack.c.0.s8 %v1194
        %v1196 = vlaneseq
        %v1197 = vshrl.u32 %v1196, 7
        %v1198 = vsub.s32 %v1195, %v1197
        %v1199 = vrot.slane %v1191, %v1198
        %v1201 = vunpack.c.l.s4 1983009808
        %v1202 = vunpack.c.0.s8 %v1201
        %v1203 = vlaneseq
        %v1204 = vshrl.u32 %v1203, 7
        %v1205 = vsub.s32 %v1202, %v1204
        %v1206 = vrot.slane %v1192, %v1205
        %v1207 = vcombine.low %v1017, %v1021
        %v1208 = vcombine.high %v1017, %v1021
        %v1210 = vunpack.c.l.s4 1983009808
        %v1211 = vunpack.c.0.s8 %v1210
        %v1212 = vlaneseq
        %v1213 = vshrl.u32 %v1212, 7
        %v1214 = vsub.s32 %v1211, %v1213
        %v1215 = vrot.slane %v1207, %v1214
        %v1217 = vunpack.c.l.s4 1983009808
        %v1218 = vunpack.c.0.s8 %v1217
        %v1219 = vlaneseq
        %v1220 = vshrl.u32 %v1219, 7
        %v1221 = vsub.s32 %v1218, %v1220
        %v1222 = vrot.slane %v1208, %v1221
        %v1223 = vcombine.low %v1167, %v1183
        %v1224 = vcombine.high %v1167, %v1183
        %v1226 = vunpack.c.l.s4 1934713408
        %v1227 = vunpack.c.0.s8 %v1226
        %v1228 = vlaneseq
        %v1229 = vshrl.u32 %v1228, 7
        %v1230 = vsub.s32 %v1227, %v1229
        %v1231 = vrot.slane %v1223, %v1230
        %v1233 = vunpack.c.l.s4 1934713408
        %v1234 = vunpack.c.0.s8 %v1233
        %v1235 = vlaneseq
        %v1236 = vshrl.u32 %v1235, 7
        %v1237 = vsub.s32 %v1234, %v1236
        %v1238 = vrot.slane %v1224, %v1237
        %v1239 = vcombine.low %v1174, %v1190
        %v1240 = vcombine.high %v1174, %v1190
        %v1242 = vunpack.c.l.s4 1934713408
        %v1243 = vunpack.c.0.s8 %v1242
        %v1244 = vlaneseq
        %v1245 = vshrl.u32 %v1244, 7
        %v1246 = vsub.s32 %v1243, %v1245
        %v1247 = vrot.slane %v1239, %v1246
        %v1249 = vunpack.c.l.s4 1934713408
        %v1250 = vunpack.c.0.s8 %v1249
        %v1251 = vlaneseq
        %v1252 = vshrl.u32 %v1251, 7
        %v1253 = vsub.s32 %v1250, %v1252
        %v1254 = vrot.slane %v1240, %v1253
        %v1255 = vcombine.low %v1199, %v1215
        %v1256 = vcombine.high %v1199, %v1215
        %v1258 = vunpack.c.l.s4 1934713408
        %v1259 = vunpack.c.0.s8 %v1258
        %v1260 = vlaneseq
        %v1261 = vshrl.u32 %v1260, 7
        %v1262 = vsub.s32 %v1259, %v1261
        %v1263 = vrot.slane %v1255, %v1262
        %v1265 = vunpack.c.l.s4 1934713408
        %v1266 = vunpack.c.0.s8 %v1265
        %v1267 = vlaneseq
        %v1268 = vshrl.u32 %v1267, 7
        %v1269 = vsub.s32 %v1266, %v1268
        %v1270 = vrot.slane %v1256, %v1269
        %v1271 = vcombine.low %v1206, %v1222
        %v1272 = vcombine.high %v1206, %v1222
        %v1274 = vunpack.c.l.s4 1934713408
        %v1275 = vunpack.c.0.s8 %v1274
        %v1276 = vlaneseq
        %v1277 = vshrl.u32 %v1276, 7
        %v1278 = vsub.s32 %v1275, %v1277
        %v1279 = vrot.slane %v1271, %v1278
        %v1281 = vunpack.c.l.s4 1934713408
        %v1282 = vunpack.c.0.s8 %v1281
        %v1283 = vlaneseq
        %v1284 = vshrl.u32 %v1283, 7
        %v1285 = vsub.s32 %v1282, %v1284
        %v1286 = vrot.slane %v1272, %v1285
        %v1287 = vcombine.low %v1231, %v1263
        %v1288 = vcombine.high %v1231, %v1263
        %v1289 = vcombine.low %v1238, %v1270
        %v1290 = vcombine.high %v1238, %v1270
        %v1291 = vcombine.low %v1247, %v1279
        %v1292 = vcombine.high %v1247, %v1279
        %v1293 = vcombine.low %v1254, %v1286
        %v1294 = vcombine.high %v1254, %v1286
        %vm1295 = vcmask 523264
        %v1296 = vsel %vm1295, %v1151, 0.0
        %v1297 = vsel %vm1295, %v1287, 0.0
        %v1298 = vadd.f32 %v1296, %v1297
        %v1299 = vrot.slane %v1298, 4
        %v1300 = vadd.f32 %v1298, %v1299
        %v1301 = vrot.slane %v1300, 2
        %v1302 = vadd.f32 %v1300, %v1301
        %v1303 = vrot.slane %v1302, 1
        %v1304 = vadd.f32 %v1302, %v1303
        %v1305 = vsel %vm1295, %v1152, 0.0
        %v1306 = vsel %vm1295, %v1288, 0.0
        %v1307 = vadd.f32 %v1305, %v1306
        %v1308 = vrot.slane %v1307, 4
        %v1309 = vadd.f32 %v1307, %v1308
        %v1310 = vrot.slane %v1309, 2
        %v1311 = vadd.f32 %v1309, %v1310
        %v1312 = vrot.slane %v1311, 1
        %v1313 = vadd.f32 %v1311, %v1312
        %v1314 = vsel %vm1295, %v1153, 0.0
        %v1315 = vsel %vm1295, %v1289, 0.0
        %v1316 = vadd.f32 %v1314, %v1315
        %v1317 = vrot.slane %v1316, 4
        %v1318 = vadd.f32 %v1316, %v1317
        %v1319 = vrot.slane %v1318, 2
        %v1320 = vadd.f32 %v1318, %v1319
        %v1321 = vrot.slane %v1320, 1
        %v1322 = vadd.f32 %v1320, %v1321
        %v1323 = vsel %vm1295, %v1154, 0.0
        %v1324 = vsel %vm1295, %v1290, 0.0
        %v1325 = vadd.f32 %v1323, %v1324
        %v1326 = vrot.slane %v1325, 4
        %v1327 = vadd.f32 %v1325, %v1326
        %v1328 = vrot.slane %v1327, 2
        %v1329 = vadd.f32 %v1327, %v1328
        %v1330 = vrot.slane %v1329, 1
        %v1331 = vadd.f32 %v1329, %v1330
        %v1332 = vsel %vm1295, %v1155, 0.0
        %v1333 = vsel %vm1295, %v1291, 0.0
        %v1334 = vadd.f32 %v1332, %v1333
        %v1335 = vrot.slane %v1334, 4
        %v1336 = vadd.f32 %v1334, %v1335
        %v1337 = vrot.slane %v1336, 2
        %v1338 = vadd.f32 %v1336, %v1337
        %v1339 = vrot.slane %v1338, 1
        %v1340 = vadd.f32 %v1338, %v1339
        %v1341 = vsel %vm1295, %v1156, 0.0
        %v1342 = vsel %vm1295, %v1292, 0.0
        %v1343 = vadd.f32 %v1341, %v1342
        %v1344 = vrot.slane %v1343, 4
        %v1345 = vadd.f32 %v1343, %v1344
        %v1346 = vrot.slane %v1345, 2
        %v1347 = vadd.f32 %v1345, %v1346
        %v1348 = vrot.slane %v1347, 1
        %v1349 = vadd.f32 %v1347, %v1348
        %v1350 = vsel %vm1295, %v1157, 0.0
        %v1351 = vsel %vm1295, %v1293, 0.0
        %v1352 = vadd.f32 %v1350, %v1351
        %v1353 = vrot.slane %v1352, 4
        %v1354 = vadd.f32 %v1352, %v1353
        %v1355 = vrot.slane %v1354, 2
        %v1356 = vadd.f32 %v1354, %v1355
        %v1357 = vrot.slane %v1356, 1
        %v1358 = vadd.f32 %v1356, %v1357
        %v1359 = vsel %vm1295, %v1158, 0.0
        %v1360 = vsel %vm1295, %v1294, 0.0
        %v1361 = vadd.f32 %v1359, %v1360
        %v1362 = vrot.slane %v1361, 4
        %v1363 = vadd.f32 %v1361, %v1362
        %v1364 = vrot.slane %v1363, 2
        %v1365 = vadd.f32 %v1363, %v1364
        %v1366 = vrot.slane %v1365, 1
        %v1367 = vadd.f32 %v1365, %v1366
        %vm1376 = vcmask 1041409
        %v1377 = vsel %vm1376, %v1313, %v1304
        %vm1378 = vcmask 1042434
        %v1379 = vsel %vm1378, %v1322, %v1377
        %vm1380 = vcmask 1043459
        %v1381 = vsel %vm1380, %v1331, %v1379
        %vm1382 = vcmask 1044484
        %v1383 = vsel %vm1382, %v1340, %v1381
        %vm1384 = vcmask 1045509
        %v1385 = vsel %vm1384, %v1349, %v1383
        %vm1386 = vcmask 1046534
        %v1387 = vsel %vm1386, %v1358, %v1385
        %vm1388 = vcmask 1047559
        %v1389 = vsel %vm1388, %v1367, %v1387
        %v1391 = vadd.f32 %v244, %v1389
        %s1392 = scalar_lea.vmem %s209, 16 [#allocation8]
        %v1393 = vld [vmem:[%s1392] sm:$0xff]
        %v1394 = vld [vmem:[%s1392 + $0x8] sm:$0xff]
        %v1397 = vcombine.high %v1393, %v1393
        %v1399 = vunpack.c.l.s4 1966171168
        %v1400 = vunpack.c.0.s8 %v1399
        %v1401 = vlaneseq
        %v1402 = vshrl.u32 %v1401, 7
        %v1403 = vsub.s32 %v1400, %v1402
        %v1404 = vrot.slane %v1393, %v1403
        %v1406 = vunpack.c.l.s4 1966171168
        %v1407 = vunpack.c.0.s8 %v1406
        %v1408 = vlaneseq
        %v1409 = vshrl.u32 %v1408, 7
        %v1410 = vsub.s32 %v1407, %v1409
        %v1411 = vrot.slane %v1397, %v1410
        %v1412 = vcombine.high %v1404, %v1404
        %v1413 = vcombine.high %v1411, %v1411
        %v1415 = vunpack.c.l.s4 1966171168
        %v1416 = vunpack.c.0.s8 %v1415
        %v1417 = vlaneseq
        %v1418 = vshrl.u32 %v1417, 7
        %v1419 = vsub.s32 %v1416, %v1418
        %v1420 = vrot.slane %v1404, %v1419
        %v1422 = vunpack.c.l.s4 1966171168
        %v1423 = vunpack.c.0.s8 %v1422
        %v1424 = vlaneseq
        %v1425 = vshrl.u32 %v1424, 7
        %v1426 = vsub.s32 %v1423, %v1425
        %v1427 = vrot.slane %v1411, %v1426
        %v1429 = vunpack.c.l.s4 1966171168
        %v1430 = vunpack.c.0.s8 %v1429
        %v1431 = vlaneseq
        %v1432 = vshrl.u32 %v1431, 7
        %v1433 = vsub.s32 %v1430, %v1432
        %v1434 = vrot.slane %v1412, %v1433
        %v1436 = vunpack.c.l.s4 1966171168
        %v1437 = vunpack.c.0.s8 %v1436
        %v1438 = vlaneseq
        %v1439 = vshrl.u32 %v1438, 7
        %v1440 = vsub.s32 %v1437, %v1439
        %v1441 = vrot.slane %v1413, %v1440
        %v1442 = vcombine.high %v1420, %v1420
        %v1443 = vcombine.high %v1427, %v1427
        %v1444 = vcombine.high %v1434, %v1434
        %v1445 = vcombine.high %v1441, %v1441
        %v1446 = vcombine.high %v1394, %v1394
        %v1448 = vunpack.c.l.s4 1966171168
        %v1449 = vunpack.c.0.s8 %v1448
        %v1450 = vlaneseq
        %v1451 = vshrl.u32 %v1450, 7
        %v1452 = vsub.s32 %v1449, %v1451
        %v1453 = vrot.slane %v1394, %v1452
        %v1455 = vunpack.c.l.s4 1966171168
        %v1456 = vunpack.c.0.s8 %v1455
        %v1457 = vlaneseq
        %v1458 = vshrl.u32 %v1457, 7
        %v1459 = vsub.s32 %v1456, %v1458
        %v1460 = vrot.slane %v1446, %v1459
        %v1461 = vcombine.high %v1453, %v1453
        %v1462 = vcombine.high %v1460, %v1460
        %v1464 = vunpack.c.l.s4 1966171168
        %v1465 = vunpack.c.0.s8 %v1464
        %v1466 = vlaneseq
        %v1467 = vshrl.u32 %v1466, 7
        %v1468 = vsub.s32 %v1465, %v1467
        %v1469 = vrot.slane %v1453, %v1468
        %v1471 = vunpack.c.l.s4 1966171168
        %v1472 = vunpack.c.0.s8 %v1471
        %v1473 = vlaneseq
        %v1474 = vshrl.u32 %v1473, 7
        %v1475 = vsub.s32 %v1472, %v1474
        %v1476 = vrot.slane %v1460, %v1475
        %v1478 = vunpack.c.l.s4 1966171168
        %v1479 = vunpack.c.0.s8 %v1478
        %v1480 = vlaneseq
        %v1481 = vshrl.u32 %v1480, 7
        %v1482 = vsub.s32 %v1479, %v1481
        %v1483 = vrot.slane %v1461, %v1482
        %v1485 = vunpack.c.l.s4 1966171168
        %v1486 = vunpack.c.0.s8 %v1485
        %v1487 = vlaneseq
        %v1488 = vshrl.u32 %v1487, 7
        %v1489 = vsub.s32 %v1486, %v1488
        %v1490 = vrot.slane %v1462, %v1489
        %v1491 = vcombine.high %v1469, %v1469
        %v1492 = vcombine.high %v1476, %v1476
        %v1493 = vcombine.high %v1483, %v1483
        %v1494 = vcombine.high %v1490, %v1490
        %v1495 = vlaneseq
        %v1496 = vshrl.u32 %v1495, 7
        %v1497 = vsub.s32 0, %v1496
        %v1498 = vrot.slane %v1420, %v1497
        %v1499 = vlaneseq
        %v1500 = vshrl.u32 %v1499, 7
        %v1501 = vsub.s32 0, %v1500
        %v1502 = vrot.slane %v1434, %v1501
        %v1503 = vlaneseq
        %v1504 = vshrl.u32 %v1503, 7
        %v1505 = vsub.s32 0, %v1504
        %v1506 = vrot.slane %v1442, %v1505
        %v1507 = vlaneseq
        %v1508 = vshrl.u32 %v1507, 7
        %v1509 = vsub.s32 0, %v1508
        %v1510 = vrot.slane %v1444, %v1509
        %v1511 = vlaneseq
        %v1512 = vshrl.u32 %v1511, 7
        %v1513 = vsub.s32 0, %v1512
        %v1514 = vrot.slane %v1427, %v1513
        %v1515 = vlaneseq
        %v1516 = vshrl.u32 %v1515, 7
        %v1517 = vsub.s32 0, %v1516
        %v1518 = vrot.slane %v1441, %v1517
        %v1519 = vlaneseq
        %v1520 = vshrl.u32 %v1519, 7
        %v1521 = vsub.s32 0, %v1520
        %v1522 = vrot.slane %v1443, %v1521
        %v1523 = vlaneseq
        %v1524 = vshrl.u32 %v1523, 7
        %v1525 = vsub.s32 0, %v1524
        %v1526 = vrot.slane %v1445, %v1525
        %v1527 = vlaneseq
        %v1528 = vshrl.u32 %v1527, 7
        %v1529 = vsub.s32 0, %v1528
        %v1530 = vrot.slane %v1469, %v1529
        %v1531 = vlaneseq
        %v1532 = vshrl.u32 %v1531, 7
        %v1533 = vsub.s32 0, %v1532
        %v1534 = vrot.slane %v1483, %v1533
        %v1535 = vlaneseq
        %v1536 = vshrl.u32 %v1535, 7
        %v1537 = vsub.s32 0, %v1536
        %v1538 = vrot.slane %v1491, %v1537
        %v1539 = vlaneseq
        %v1540 = vshrl.u32 %v1539, 7
        %v1541 = vsub.s32 0, %v1540
        %v1542 = vrot.slane %v1493, %v1541
        %v1543 = vlaneseq
        %v1544 = vshrl.u32 %v1543, 7
        %v1545 = vsub.s32 0, %v1544
        %v1546 = vrot.slane %v1476, %v1545
        %v1547 = vlaneseq
        %v1548 = vshrl.u32 %v1547, 7
        %v1549 = vsub.s32 0, %v1548
        %v1550 = vrot.slane %v1490, %v1549
        %v1551 = vlaneseq
        %v1552 = vshrl.u32 %v1551, 7
        %v1553 = vsub.s32 0, %v1552
        %v1554 = vrot.slane %v1492, %v1553
        %v1555 = vlaneseq
        %v1556 = vshrl.u32 %v1555, 7
        %v1557 = vsub.s32 0, %v1556
        %v1558 = vrot.slane %v1494, %v1557
        %v1575 = vsub.f32 %v1498, %v235
        %v1576 = vsub.f32 %v1498, %v236
        %v1577 = vsub.f32 %v1498, %v237
        %v1578 = vsub.f32 %v1498, %v238
        %v1579 = vsub.f32 %v1498, %v239
        %v1580 = vsub.f32 %v1498, %v240
        %v1581 = vsub.f32 %v1498, %v241
        %v1582 = vsub.f32 %v1498, %v242
        %v1583 = vsub.f32 %v1502, %v235
        %v1584 = vsub.f32 %v1502, %v236
        %v1585 = vsub.f32 %v1502, %v237
        %v1586 = vsub.f32 %v1502, %v238
        %v1587 = vsub.f32 %v1502, %v239
        %v1588 = vsub.f32 %v1502, %v240
        %v1589 = vsub.f32 %v1502, %v241
        %v1590 = vsub.f32 %v1502, %v242
        %v1591 = vsub.f32 %v1506, %v235
        %v1592 = vsub.f32 %v1506, %v236
        %v1593 = vsub.f32 %v1506, %v237
        %v1594 = vsub.f32 %v1506, %v238
        %v1595 = vsub.f32 %v1506, %v239
        %v1596 = vsub.f32 %v1506, %v240
        %v1597 = vsub.f32 %v1506, %v241
        %v1598 = vsub.f32 %v1506, %v242
        %v1599 = vsub.f32 %v1510, %v235
        %v1600 = vsub.f32 %v1510, %v236
        %v1601 = vsub.f32 %v1510, %v237
        %v1602 = vsub.f32 %v1510, %v238
        %v1603 = vsub.f32 %v1510, %v239
        %v1604 = vsub.f32 %v1510, %v240
        %v1605 = vsub.f32 %v1510, %v241
        %v1606 = vsub.f32 %v1510, %v242
        %v1607 = vsub.f32 %v1514, %v235
        %v1608 = vsub.f32 %v1514, %v236
        %v1609 = vsub.f32 %v1514, %v237
        %v1610 = vsub.f32 %v1514, %v238
        %v1611 = vsub.f32 %v1514, %v239
        %v1612 = vsub.f32 %v1514, %v240
        %v1613 = vsub.f32 %v1514, %v241
        %v1614 = vsub.f32 %v1514, %v242
        %v1615 = vsub.f32 %v1518, %v235
        %v1616 = vsub.f32 %v1518, %v236
        %v1617 = vsub.f32 %v1518, %v237
        %v1618 = vsub.f32 %v1518, %v238
        %v1619 = vsub.f32 %v1518, %v239
        %v1620 = vsub.f32 %v1518, %v240
        %v1621 = vsub.f32 %v1518, %v241
        %v1622 = vsub.f32 %v1518, %v242
        %v1623 = vsub.f32 %v1522, %v235
        %v1624 = vsub.f32 %v1522, %v236
        %v1625 = vsub.f32 %v1522, %v237
        %v1626 = vsub.f32 %v1522, %v238
        %v1627 = vsub.f32 %v1522, %v239
        %v1628 = vsub.f32 %v1522, %v240
        %v1629 = vsub.f32 %v1522, %v241
        %v1630 = vsub.f32 %v1522, %v242
        %v1631 = vsub.f32 %v1526, %v235
        %v1632 = vsub.f32 %v1526, %v236
        %v1633 = vsub.f32 %v1526, %v237
        %v1634 = vsub.f32 %v1526, %v238
        %v1635 = vsub.f32 %v1526, %v239
        %v1636 = vsub.f32 %v1526, %v240
        %v1637 = vsub.f32 %v1526, %v241
        %v1638 = vsub.f32 %v1526, %v242
        %v1639 = vsub.f32 %v1530, %v235
        %v1640 = vsub.f32 %v1530, %v236
        %v1641 = vsub.f32 %v1530, %v237
        %v1642 = vsub.f32 %v1530, %v238
        %v1643 = vsub.f32 %v1530, %v239
        %v1644 = vsub.f32 %v1530, %v240
        %v1645 = vsub.f32 %v1530, %v241
        %v1646 = vsub.f32 %v1530, %v242
        %v1647 = vsub.f32 %v1534, %v235
        %v1648 = vsub.f32 %v1534, %v236
        %v1649 = vsub.f32 %v1534, %v237
        %v1650 = vsub.f32 %v1534, %v238
        %v1651 = vsub.f32 %v1534, %v239
        %v1652 = vsub.f32 %v1534, %v240
        %v1653 = vsub.f32 %v1534, %v241
        %v1654 = vsub.f32 %v1534, %v242
        %v1655 = vsub.f32 %v1538, %v235
        %v1656 = vsub.f32 %v1538, %v236
        %v1657 = vsub.f32 %v1538, %v237
        %v1658 = vsub.f32 %v1538, %v238
        %v1659 = vsub.f32 %v1538, %v239
        %v1660 = vsub.f32 %v1538, %v240
        %v1661 = vsub.f32 %v1538, %v241
        %v1662 = vsub.f32 %v1538, %v242
        %v1663 = vsub.f32 %v1542, %v235
        %v1664 = vsub.f32 %v1542, %v236
        %v1665 = vsub.f32 %v1542, %v237
        %v1666 = vsub.f32 %v1542, %v238
        %v1667 = vsub.f32 %v1542, %v239
        %v1668 = vsub.f32 %v1542, %v240
        %v1669 = vsub.f32 %v1542, %v241
        %v1670 = vsub.f32 %v1542, %v242
        %v1671 = vsub.f32 %v1546, %v235
        %v1672 = vsub.f32 %v1546, %v236
        %v1673 = vsub.f32 %v1546, %v237
        %v1674 = vsub.f32 %v1546, %v238
        %v1675 = vsub.f32 %v1546, %v239
        %v1676 = vsub.f32 %v1546, %v240
        %v1677 = vsub.f32 %v1546, %v241
        %v1678 = vsub.f32 %v1546, %v242
        %v1679 = vsub.f32 %v1550, %v235
        %v1680 = vsub.f32 %v1550, %v236
        %v1681 = vsub.f32 %v1550, %v237
        %v1682 = vsub.f32 %v1550, %v238
        %v1683 = vsub.f32 %v1550, %v239
        %v1684 = vsub.f32 %v1550, %v240
        %v1685 = vsub.f32 %v1550, %v241
        %v1686 = vsub.f32 %v1550, %v242
        %v1687 = vsub.f32 %v1554, %v235
        %v1688 = vsub.f32 %v1554, %v236
        %v1689 = vsub.f32 %v1554, %v237
        %v1690 = vsub.f32 %v1554, %v238
        %v1691 = vsub.f32 %v1554, %v239
        %v1692 = vsub.f32 %v1554, %v240
        %v1693 = vsub.f32 %v1554, %v241
        %v1694 = vsub.f32 %v1554, %v242
        %v1695 = vsub.f32 %v1558, %v235
        %v1696 = vsub.f32 %v1558, %v236
        %v1697 = vsub.f32 %v1558, %v237
        %v1698 = vsub.f32 %v1558, %v238
        %v1699 = vsub.f32 %v1558, %v239
        %v1700 = vsub.f32 %v1558, %v240
        %v1701 = vsub.f32 %v1558, %v241
        %v1702 = vsub.f32 %v1558, %v242
        %v1703 = vand.u32 2147483647, %v1575
        %v1704 = vand.u32 2147483647, %v1576
        %v1705 = vand.u32 2147483647, %v1577
        %v1706 = vand.u32 2147483647, %v1578
        %v1707 = vand.u32 2147483647, %v1579
        %v1708 = vand.u32 2147483647, %v1580
        %v1709 = vand.u32 2147483647, %v1581
        %v1710 = vand.u32 2147483647, %v1582
        %v1711 = vand.u32 2147483647, %v1583
        %v1712 = vand.u32 2147483647, %v1584
        %v1713 = vand.u32 2147483647, %v1585
        %v1714 = vand.u32 2147483647, %v1586
        %v1715 = vand.u32 2147483647, %v1587
        %v1716 = vand.u32 2147483647, %v1588
        %v1717 = vand.u32 2147483647, %v1589
        %v1718 = vand.u32 2147483647, %v1590
        %v1719 = vand.u32 2147483647, %v1591
        %v1720 = vand.u32 2147483647, %v1592
        %v1721 = vand.u32 2147483647, %v1593
        %v1722 = vand.u32 2147483647, %v1594
        %v1723 = vand.u32 2147483647, %v1595
        %v1724 = vand.u32 2147483647, %v1596
        %v1725 = vand.u32 2147483647, %v1597
        %v1726 = vand.u32 2147483647, %v1598
        %v1727 = vand.u32 2147483647, %v1599
        %v1728 = vand.u32 2147483647, %v1600
        %v1729 = vand.u32 2147483647, %v1601
        %v1730 = vand.u32 2147483647, %v1602
        %v1731 = vand.u32 2147483647, %v1603
        %v1732 = vand.u32 2147483647, %v1604
        %v1733 = vand.u32 2147483647, %v1605
        %v1734 = vand.u32 2147483647, %v1606
        %v1735 = vand.u32 2147483647, %v1607
        %v1736 = vand.u32 2147483647, %v1608
        %v1737 = vand.u32 2147483647, %v1609
        %v1738 = vand.u32 2147483647, %v1610
        %v1739 = vand.u32 2147483647, %v1611
        %v1740 = vand.u32 2147483647, %v1612
        %v1741 = vand.u32 2147483647, %v1613
        %v1742 = vand.u32 2147483647, %v1614
        %v1743 = vand.u32 2147483647, %v1615
        %v1744 = vand.u32 2147483647, %v1616
        %v1745 = vand.u32 2147483647, %v1617
        %v1746 = vand.u32 2147483647, %v1618
        %v1747 = vand.u32 2147483647, %v1619
        %v1748 = vand.u32 2147483647, %v1620
        %v1749 = vand.u32 2147483647, %v1621
        %v1750 = vand.u32 2147483647, %v1622
        %v1751 = vand.u32 2147483647, %v1623
        %v1752 = vand.u32 2147483647, %v1624
        %v1753 = vand.u32 2147483647, %v1625
        %v1754 = vand.u32 2147483647, %v1626
        %v1755 = vand.u32 2147483647, %v1627
        %v1756 = vand.u32 2147483647, %v1628
        %v1757 = vand.u32 2147483647, %v1629
        %v1758 = vand.u32 2147483647, %v1630
        %v1759 = vand.u32 2147483647, %v1631
        %v1760 = vand.u32 2147483647, %v1632
        %v1761 = vand.u32 2147483647, %v1633
        %v1762 = vand.u32 2147483647, %v1634
        %v1763 = vand.u32 2147483647, %v1635
        %v1764 = vand.u32 2147483647, %v1636
        %v1765 = vand.u32 2147483647, %v1637
        %v1766 = vand.u32 2147483647, %v1638
        %v1767 = vand.u32 2147483647, %v1639
        %v1768 = vand.u32 2147483647, %v1640
        %v1769 = vand.u32 2147483647, %v1641
        %v1770 = vand.u32 2147483647, %v1642
        %v1771 = vand.u32 2147483647, %v1643
        %v1772 = vand.u32 2147483647, %v1644
        %v1773 = vand.u32 2147483647, %v1645
        %v1774 = vand.u32 2147483647, %v1646
        %v1775 = vand.u32 2147483647, %v1647
        %v1776 = vand.u32 2147483647, %v1648
        %v1777 = vand.u32 2147483647, %v1649
        %v1778 = vand.u32 2147483647, %v1650
        %v1779 = vand.u32 2147483647, %v1651
        %v1780 = vand.u32 2147483647, %v1652
        %v1781 = vand.u32 2147483647, %v1653
        %v1782 = vand.u32 2147483647, %v1654
        %v1783 = vand.u32 2147483647, %v1655
        %v1784 = vand.u32 2147483647, %v1656
        %v1785 = vand.u32 2147483647, %v1657
        %v1786 = vand.u32 2147483647, %v1658
        %v1787 = vand.u32 2147483647, %v1659
        %v1788 = vand.u32 2147483647, %v1660
        %v1789 = vand.u32 2147483647, %v1661
        %v1790 = vand.u32 2147483647, %v1662
        %v1791 = vand.u32 2147483647, %v1663
        %v1792 = vand.u32 2147483647, %v1664
        %v1793 = vand.u32 2147483647, %v1665
        %v1794 = vand.u32 2147483647, %v1666
        %v1795 = vand.u32 2147483647, %v1667
        %v1796 = vand.u32 2147483647, %v1668
        %v1797 = vand.u32 2147483647, %v1669
        %v1798 = vand.u32 2147483647, %v1670
        %v1799 = vand.u32 2147483647, %v1671
        %v1800 = vand.u32 2147483647, %v1672
        %v1801 = vand.u32 2147483647, %v1673
        %v1802 = vand.u32 2147483647, %v1674
        %v1803 = vand.u32 2147483647, %v1675
        %v1804 = vand.u32 2147483647, %v1676
        %v1805 = vand.u32 2147483647, %v1677
        %v1806 = vand.u32 2147483647, %v1678
        %v1807 = vand.u32 2147483647, %v1679
        %v1808 = vand.u32 2147483647, %v1680
        %v1809 = vand.u32 2147483647, %v1681
        %v1810 = vand.u32 2147483647, %v1682
        %v1811 = vand.u32 2147483647, %v1683
        %v1812 = vand.u32 2147483647, %v1684
        %v1813 = vand.u32 2147483647, %v1685
        %v1814 = vand.u32 2147483647, %v1686
        %v1815 = vand.u32 2147483647, %v1687
        %v1816 = vand.u32 2147483647, %v1688
        %v1817 = vand.u32 2147483647, %v1689
        %v1818 = vand.u32 2147483647, %v1690
        %v1819 = vand.u32 2147483647, %v1691
        %v1820 = vand.u32 2147483647, %v1692
        %v1821 = vand.u32 2147483647, %v1693
        %v1822 = vand.u32 2147483647, %v1694
        %v1823 = vand.u32 2147483647, %v1695
        %v1824 = vand.u32 2147483647, %v1696
        %v1825 = vand.u32 2147483647, %v1697
        %v1826 = vand.u32 2147483647, %v1698
        %v1827 = vand.u32 2147483647, %v1699
        %v1828 = vand.u32 2147483647, %v1700
        %v1829 = vand.u32 2147483647, %v1701
        %v1830 = vand.u32 2147483647, %v1702
        %1831 = vmatprep.subr.mxu0 0.0
        %1832 = vmatpush1.xpose.msra.mxu0 %v1703
        %1833 = vmatprep.subr.mxu0 0.0
        %1834 = vmatpush1.xpose.msra.mxu0 %v1704
        %1835 = vmatprep.subr.mxu0 0.0
        %1836 = vmatpush1.xpose.msra.mxu0 %v1705
        %1837 = vmatprep.subr.mxu0 0.0
        %1838 = vmatpush1.xpose.msra.mxu0 %v1706
        %1839 = vmatprep.subr.mxu0 0.0
        %1840 = vmatpush1.xpose.msra.mxu0 %v1707
        %1841 = vmatprep.subr.mxu0 0.0
        %1842 = vmatpush1.xpose.msra.mxu0 %v1708
        %1843 = vmatprep.subr.mxu0 0.0
        %1844 = vmatpush1.xpose.msra.mxu0 %v1709
        %1845 = vmatprep.subr.mxu0 0.0
        %1846 = vmatpush1.xpose.msra.mxu0 %v1710
        %1847 = vmatprep.subr.mxu0 0.0
        %1848 = vmatpush1.xpose.msra.mxu0 %v1711
        %1849 = vmatprep.subr.mxu0 0.0
        %1850 = vmatpush1.xpose.msra.mxu0 %v1712
        %1851 = vmatprep.subr.mxu0 0.0
        %1852 = vmatpush1.xpose.msra.mxu0 %v1713
        %1853 = vmatprep.subr.mxu0 0.0
        %1854 = vmatpush1.xpose.msra.mxu0 %v1714
        %1855 = vmatprep.subr.mxu0 0.0
        %1856 = vmatpush1.xpose.msra.mxu0 %v1715
        %1857 = vmatprep.subr.mxu0 0.0
        %1858 = vmatpush1.xpose.msra.mxu0 %v1716
        %1859 = vmatprep.subr.mxu0 0.0
        %1860 = vmatpush1.xpose.msra.mxu0 %v1717
        %1861 = vmatprep.subr.mxu0 0.0
        %1862 = vmatpush1.xpose.msra.mxu0 %v1718
        %1863 = vmatprep.subr.mxu0 0.0
        %1864 = vmatpush1.xpose.msra.mxu0 %v1719
        %1865 = vmatprep.subr.mxu0 0.0
        %1866 = vmatpush1.xpose.msra.mxu0 %v1720
        %1867 = vmatprep.subr.mxu0 0.0
        %1868 = vmatpush1.xpose.msra.mxu0 %v1721
        %1869 = vmatprep.subr.mxu0 0.0
        %1870 = vmatpush1.xpose.msra.mxu0 %v1722
        %1871 = vmatprep.subr.mxu0 0.0
        %1872 = vmatpush1.xpose.msra.mxu0 %v1723
        %1873 = vmatprep.subr.mxu0 0.0
        %1874 = vmatpush1.xpose.msra.mxu0 %v1724
        %1875 = vmatprep.subr.mxu0 0.0
        %1876 = vmatpush1.xpose.msra.mxu0 %v1725
        %1877 = vmatprep.subr.mxu0 0.0
        %1878 = vmatpush1.xpose.msra.mxu0 %v1726
        %1879 = vmatprep.subr.mxu0 0.0
        %1880 = vmatpush1.xpose.msra.mxu0 %v1727
        %1881 = vmatprep.subr.mxu0 0.0
        %1882 = vmatpush1.xpose.msra.mxu0 %v1728
        %1883 = vmatprep.subr.mxu0 0.0
        %1884 = vmatpush1.xpose.msra.mxu0 %v1729
        %1885 = vmatprep.subr.mxu0 0.0
        %1886 = vmatpush1.xpose.msra.mxu0 %v1730
        %1887 = vmatprep.subr.mxu0 0.0
        %1888 = vmatpush1.xpose.msra.mxu0 %v1731
        %1889 = vmatprep.subr.mxu0 0.0
        %1890 = vmatpush1.xpose.msra.mxu0 %v1732
        %1891 = vmatprep.subr.mxu0 0.0
        %1892 = vmatpush1.xpose.msra.mxu0 %v1733
        %1893 = vmatprep.subr.mxu0 0.0
        %1894 = vmatpush1.xpose.msra.mxu0 %v1734
        %1895 = vmatprep.mubr.f32.mxu0 0.0
        %1896 = vmatmul.mubr.f32.gmra.mrb[0].mxu0 %v243
        %v1897 = vpop.f32.mrb[0].mxu0
        %v1898 = vadd.f32 0.0, %v1897
        %v1899 = vpop.f32.mrb[0].mxu0
        %v1900 = vadd.f32 0.0, %v1899
        %1901 = vdwg.mxu0
        %1902 = vmatprep.subr.mxu0 0.0
        %1903 = vmatpush1.xpose.msra.mxu0 %v1735
        %1904 = vmatprep.subr.mxu0 0.0
        %1905 = vmatpush1.xpose.msra.mxu0 %v1736
        %1906 = vmatprep.subr.mxu0 0.0
        %1907 = vmatpush1.xpose.msra.mxu0 %v1737
        %1908 = vmatprep.subr.mxu0 0.0
        %1909 = vmatpush1.xpose.msra.mxu0 %v1738
        %1910 = vmatprep.subr.mxu0 0.0
        %1911 = vmatpush1.xpose.msra.mxu0 %v1739
        %1912 = vmatprep.subr.mxu0 0.0
        %1913 = vmatpush1.xpose.msra.mxu0 %v1740
        %1914 = vmatprep.subr.mxu0 0.0
        %1915 = vmatpush1.xpose.msra.mxu0 %v1741
        %1916 = vmatprep.subr.mxu0 0.0
        %1917 = vmatpush1.xpose.msra.mxu0 %v1742
        %1918 = vmatprep.subr.mxu0 0.0
        %1919 = vmatpush1.xpose.msra.mxu0 %v1743
        %1920 = vmatprep.subr.mxu0 0.0
        %1921 = vmatpush1.xpose.msra.mxu0 %v1744
        %1922 = vmatprep.subr.mxu0 0.0
        %1923 = vmatpush1.xpose.msra.mxu0 %v1745
        %1924 = vmatprep.subr.mxu0 0.0
        %1925 = vmatpush1.xpose.msra.mxu0 %v1746
        %1926 = vmatprep.subr.mxu0 0.0
        %1927 = vmatpush1.xpose.msra.mxu0 %v1747
        %1928 = vmatprep.subr.mxu0 0.0
        %1929 = vmatpush1.xpose.msra.mxu0 %v1748
        %1930 = vmatprep.subr.mxu0 0.0
        %1931 = vmatpush1.xpose.msra.mxu0 %v1749
        %1932 = vmatprep.subr.mxu0 0.0
        %1933 = vmatpush1.xpose.msra.mxu0 %v1750
        %1934 = vmatprep.subr.mxu0 0.0
        %1935 = vmatpush1.xpose.msra.mxu0 %v1751
        %1936 = vmatprep.subr.mxu0 0.0
        %1937 = vmatpush1.xpose.msra.mxu0 %v1752
        %1938 = vmatprep.subr.mxu0 0.0
        %1939 = vmatpush1.xpose.msra.mxu0 %v1753
        %1940 = vmatprep.subr.mxu0 0.0
        %1941 = vmatpush1.xpose.msra.mxu0 %v1754
        %1942 = vmatprep.subr.mxu0 0.0
        %1943 = vmatpush1.xpose.msra.mxu0 %v1755
        %1944 = vmatprep.subr.mxu0 0.0
        %1945 = vmatpush1.xpose.msra.mxu0 %v1756
        %1946 = vmatprep.subr.mxu0 0.0
        %1947 = vmatpush1.xpose.msra.mxu0 %v1757
        %1948 = vmatprep.subr.mxu0 0.0
        %1949 = vmatpush1.xpose.msra.mxu0 %v1758
        %1950 = vmatprep.subr.mxu0 0.0
        %1951 = vmatpush1.xpose.msra.mxu0 %v1759
        %1952 = vmatprep.subr.mxu0 0.0
        %1953 = vmatpush1.xpose.msra.mxu0 %v1760
        %1954 = vmatprep.subr.mxu0 0.0
        %1955 = vmatpush1.xpose.msra.mxu0 %v1761
        %1956 = vmatprep.subr.mxu0 0.0
        %1957 = vmatpush1.xpose.msra.mxu0 %v1762
        %1958 = vmatprep.subr.mxu0 0.0
        %1959 = vmatpush1.xpose.msra.mxu0 %v1763
        %1960 = vmatprep.subr.mxu0 0.0
        %1961 = vmatpush1.xpose.msra.mxu0 %v1764
        %1962 = vmatprep.subr.mxu0 0.0
        %1963 = vmatpush1.xpose.msra.mxu0 %v1765
        %1964 = vmatprep.subr.mxu0 0.0
        %1965 = vmatpush1.xpose.msra.mxu0 %v1766
        %1966 = vmatprep.mubr.f32.mxu0 0.0
        %1967 = vmatmul.mubr.f32.gmra.mrb[0].mxu0 %v243
        %v1968 = vpop.f32.mrb[0].mxu0
        %v1969 = vadd.f32 0.0, %v1968
        %v1970 = vpop.f32.mrb[0].mxu0
        %v1971 = vadd.f32 0.0, %v1970
        %1972 = vdwg.mxu0
        %1973 = vmatprep.subr.mxu0 0.0
        %1974 = vmatpush1.xpose.msra.mxu0 %v1767
        %1975 = vmatprep.subr.mxu0 0.0
        %1976 = vmatpush1.xpose.msra.mxu0 %v1768
        %1977 = vmatprep.subr.mxu0 0.0
        %1978 = vmatpush1.xpose.msra.mxu0 %v1769
        %1979 = vmatprep.subr.mxu0 0.0
        %1980 = vmatpush1.xpose.msra.mxu0 %v1770
        %1981 = vmatprep.subr.mxu0 0.0
        %1982 = vmatpush1.xpose.msra.mxu0 %v1771
        %1983 = vmatprep.subr.mxu0 0.0
        %1984 = vmatpush1.xpose.msra.mxu0 %v1772
        %1985 = vmatprep.subr.mxu0 0.0
        %1986 = vmatpush1.xpose.msra.mxu0 %v1773
        %1987 = vmatprep.subr.mxu0 0.0
        %1988 = vmatpush1.xpose.msra.mxu0 %v1774
        %1989 = vmatprep.subr.mxu0 0.0
        %1990 = vmatpush1.xpose.msra.mxu0 %v1775
        %1991 = vmatprep.subr.mxu0 0.0
        %1992 = vmatpush1.xpose.msra.mxu0 %v1776
        %1993 = vmatprep.subr.mxu0 0.0
        %1994 = vmatpush1.xpose.msra.mxu0 %v1777
        %1995 = vmatprep.subr.mxu0 0.0
        %1996 = vmatpush1.xpose.msra.mxu0 %v1778
        %1997 = vmatprep.subr.mxu0 0.0
        %1998 = vmatpush1.xpose.msra.mxu0 %v1779
        %1999 = vmatprep.subr.mxu0 0.0
        %2000 = vmatpush1.xpose.msra.mxu0 %v1780
        %2001 = vmatprep.subr.mxu0 0.0
        %2002 = vmatpush1.xpose.msra.mxu0 %v1781
        %2003 = vmatprep.subr.mxu0 0.0
        %2004 = vmatpush1.xpose.msra.mxu0 %v1782
        %2005 = vmatprep.subr.mxu0 0.0
        %2006 = vmatpush1.xpose.msra.mxu0 %v1783
        %2007 = vmatprep.subr.mxu0 0.0
        %2008 = vmatpush1.xpose.msra.mxu0 %v1784
        %2009 = vmatprep.subr.mxu0 0.0
        %2010 = vmatpush1.xpose.msra.mxu0 %v1785
        %2011 = vmatprep.subr.mxu0 0.0
        %2012 = vmatpush1.xpose.msra.mxu0 %v1786
        %2013 = vmatprep.subr.mxu0 0.0
        %2014 = vmatpush1.xpose.msra.mxu0 %v1787
        %2015 = vmatprep.subr.mxu0 0.0
        %2016 = vmatpush1.xpose.msra.mxu0 %v1788
        %2017 = vmatprep.subr.mxu0 0.0
        %2018 = vmatpush1.xpose.msra.mxu0 %v1789
        %2019 = vmatprep.subr.mxu0 0.0
        %2020 = vmatpush1.xpose.msra.mxu0 %v1790
        %2021 = vmatprep.subr.mxu0 0.0
        %2022 = vmatpush1.xpose.msra.mxu0 %v1791
        %2023 = vmatprep.subr.mxu0 0.0
        %2024 = vmatpush1.xpose.msra.mxu0 %v1792
        %2025 = vmatprep.subr.mxu0 0.0
        %2026 = vmatpush1.xpose.msra.mxu0 %v1793
        %2027 = vmatprep.subr.mxu0 0.0
        %2028 = vmatpush1.xpose.msra.mxu0 %v1794
        %2029 = vmatprep.subr.mxu0 0.0
        %2030 = vmatpush1.xpose.msra.mxu0 %v1795
        %2031 = vmatprep.subr.mxu0 0.0
        %2032 = vmatpush1.xpose.msra.mxu0 %v1796
        %2033 = vmatprep.subr.mxu0 0.0
        %2034 = vmatpush1.xpose.msra.mxu0 %v1797
        %2035 = vmatprep.subr.mxu0 0.0
        %2036 = vmatpush1.xpose.msra.mxu0 %v1798
        %2037 = vmatprep.mubr.f32.mxu0 0.0
        %2038 = vmatmul.mubr.f32.gmra.mrb[0].mxu0 %v243
        %v2039 = vpop.f32.mrb[0].mxu0
        %v2040 = vadd.f32 0.0, %v2039
        %v2041 = vpop.f32.mrb[0].mxu0
        %v2042 = vadd.f32 0.0, %v2041
        %2043 = vdwg.mxu0
        %2044 = vmatprep.subr.mxu0 0.0
        %2045 = vmatpush1.xpose.msra.mxu0 %v1799
        %2046 = vmatprep.subr.mxu0 0.0
        %2047 = vmatpush1.xpose.msra.mxu0 %v1800
        %2048 = vmatprep.subr.mxu0 0.0
        %2049 = vmatpush1.xpose.msra.mxu0 %v1801
        %2050 = vmatprep.subr.mxu0 0.0
        %2051 = vmatpush1.xpose.msra.mxu0 %v1802
        %2052 = vmatprep.subr.mxu0 0.0
        %2053 = vmatpush1.xpose.msra.mxu0 %v1803
        %2054 = vmatprep.subr.mxu0 0.0
        %2055 = vmatpush1.xpose.msra.mxu0 %v1804
        %2056 = vmatprep.subr.mxu0 0.0
        %2057 = vmatpush1.xpose.msra.mxu0 %v1805
        %2058 = vmatprep.subr.mxu0 0.0
        %2059 = vmatpush1.xpose.msra.mxu0 %v1806
        %2060 = vmatprep.subr.mxu0 0.0
        %2061 = vmatpush1.xpose.msra.mxu0 %v1807
        %2062 = vmatprep.subr.mxu0 0.0
        %2063 = vmatpush1.xpose.msra.mxu0 %v1808
        %2064 = vmatprep.subr.mxu0 0.0
        %2065 = vmatpush1.xpose.msra.mxu0 %v1809
        %2066 = vmatprep.subr.mxu0 0.0
        %2067 = vmatpush1.xpose.msra.mxu0 %v1810
        %2068 = vmatprep.subr.mxu0 0.0
        %2069 = vmatpush1.xpose.msra.mxu0 %v1811
        %2070 = vmatprep.subr.mxu0 0.0
        %2071 = vmatpush1.xpose.msra.mxu0 %v1812
        %2072 = vmatprep.subr.mxu0 0.0
        %2073 = vmatpush1.xpose.msra.mxu0 %v1813
        %2074 = vmatprep.subr.mxu0 0.0
        %2075 = vmatpush1.xpose.msra.mxu0 %v1814
        %2076 = vmatprep.subr.mxu0 0.0
        %2077 = vmatpush1.xpose.msra.mxu0 %v1815
        %2078 = vmatprep.subr.mxu0 0.0
        %2079 = vmatpush1.xpose.msra.mxu0 %v1816
        %2080 = vmatprep.subr.mxu0 0.0
        %2081 = vmatpush1.xpose.msra.mxu0 %v1817
        %2082 = vmatprep.subr.mxu0 0.0
        %2083 = vmatpush1.xpose.msra.mxu0 %v1818
        %2084 = vmatprep.subr.mxu0 0.0
        %2085 = vmatpush1.xpose.msra.mxu0 %v1819
        %2086 = vmatprep.subr.mxu0 0.0
        %2087 = vmatpush1.xpose.msra.mxu0 %v1820
        %2088 = vmatprep.subr.mxu0 0.0
        %2089 = vmatpush1.xpose.msra.mxu0 %v1821
        %2090 = vmatprep.subr.mxu0 0.0
        %2091 = vmatpush1.xpose.msra.mxu0 %v1822
        %2092 = vmatprep.subr.mxu0 0.0
        %2093 = vmatpush1.xpose.msra.mxu0 %v1823
        %2094 = vmatprep.subr.mxu0 0.0
        %2095 = vmatpush1.xpose.msra.mxu0 %v1824
        %2096 = vmatprep.subr.mxu0 0.0
        %2097 = vmatpush1.xpose.msra.mxu0 %v1825
        %2098 = vmatprep.subr.mxu0 0.0
        %2099 = vmatpush1.xpose.msra.mxu0 %v1826
        %2100 = vmatprep.subr.mxu0 0.0
        %2101 = vmatpush1.xpose.msra.mxu0 %v1827
        %2102 = vmatprep.subr.mxu0 0.0
        %2103 = vmatpush1.xpose.msra.mxu0 %v1828
        %2104 = vmatprep.subr.mxu0 0.0
        %2105 = vmatpush1.xpose.msra.mxu0 %v1829
        %2106 = vmatprep.subr.mxu0 0.0
        %2107 = vmatpush1.xpose.msra.mxu0 %v1830
        %2108 = vmatprep.mubr.f32.mxu0 0.0
        %2109 = vmatmul.mubr.f32.gmra.mrb[0].mxu0 %v243
        %v2110 = vpop.f32.mrb[0].mxu0
        %v2111 = vadd.f32 0.0, %v2110
        %v2112 = vpop.f32.mrb[0].mxu0
        %v2113 = vadd.f32 0.0, %v2112
        %2114 = vdwg.mxu0
        %v2115 = vsub.f32 0.0, %v1898
        %v2116 = vsub.f32 0.0, %v1900
        %v2117 = vsub.f32 0.0, %v1969
        %v2118 = vsub.f32 0.0, %v1971
        %v2119 = vsub.f32 0.0, %v2040
        %v2120 = vsub.f32 0.0, %v2042
        %v2121 = vsub.f32 0.0, %v2111
        %v2122 = vsub.f32 0.0, %v2113
        %v2123 = vmul.f32 %v2115, 1.442695
        %v2124 = vpow.pop %v2123
        %v2125 = vmul.f32 %v2116, 1.442695
        %v2126 = vpow.pop %v2125
        %v2127 = vmul.f32 %v2117, 1.442695
        %v2128 = vpow.pop %v2127
        %v2129 = vmul.f32 %v2118, 1.442695
        %v2130 = vpow.pop %v2129
        %v2131 = vmul.f32 %v2119, 1.442695
        %v2132 = vpow.pop %v2131
        %v2133 = vmul.f32 %v2120, 1.442695
        %v2134 = vpow.pop %v2133
        %v2135 = vmul.f32 %v2121, 1.442695
        %v2136 = vpow.pop %v2135
        %v2137 = vmul.f32 %v2122, 1.442695
        %v2138 = vpow.pop %v2137
        %2140 = vrot.lane.b32.xlu0 %v2124, 64
        %v2141 = vpop.permute.xlu0 %2140
        %2144 = vrot.lane.b32.xlu0 %v2126, 64
        %v2145 = vpop.permute.xlu0 %2144
        %2148 = vrot.lane.b32.xlu0 %v2128, 64
        %v2149 = vpop.permute.xlu0 %2148
        %2152 = vrot.lane.b32.xlu0 %v2130, 64
        %v2153 = vpop.permute.xlu0 %2152
        %2156 = vrot.lane.b32.xlu0 %v2132, 64
        %v2157 = vpop.permute.xlu0 %2156
        %2160 = vrot.lane.b32.xlu0 %v2134, 64
        %v2161 = vpop.permute.xlu0 %2160
        %2164 = vrot.lane.b32.xlu0 %v2136, 64
        %v2165 = vpop.permute.xlu0 %2164
        %2168 = vrot.lane.b32.xlu0 %v2138, 64
        %v2169 = vpop.permute.xlu0 %2168
        %v2171 = vcombine.low %v2124, %v2126
        %v2172 = vcombine.high %v2124, %v2126
        %v2174 = vunpack.c.l.s4 1983009808
        %v2175 = vunpack.c.0.s8 %v2174
        %v2176 = vlaneseq
        %v2177 = vshrl.u32 %v2176, 7
        %v2178 = vsub.s32 %v2175, %v2177
        %v2179 = vrot.slane %v2171, %v2178
        %v2181 = vunpack.c.l.s4 1983009808
        %v2182 = vunpack.c.0.s8 %v2181
        %v2183 = vlaneseq
        %v2184 = vshrl.u32 %v2183, 7
        %v2185 = vsub.s32 %v2182, %v2184
        %v2186 = vrot.slane %v2172, %v2185
        %v2187 = vcombine.low %v2141, %v2145
        %v2188 = vcombine.high %v2141, %v2145
        %v2190 = vunpack.c.l.s4 1983009808
        %v2191 = vunpack.c.0.s8 %v2190
        %v2192 = vlaneseq
        %v2193 = vshrl.u32 %v2192, 7
        %v2194 = vsub.s32 %v2191, %v2193
        %v2195 = vrot.slane %v2187, %v2194
        %v2197 = vunpack.c.l.s4 1983009808
        %v2198 = vunpack.c.0.s8 %v2197
        %v2199 = vlaneseq
        %v2200 = vshrl.u32 %v2199, 7
        %v2201 = vsub.s32 %v2198, %v2200
        %v2202 = vrot.slane %v2188, %v2201
        %v2203 = vcombine.low %v2128, %v2130
        %v2204 = vcombine.high %v2128, %v2130
        %v2206 = vunpack.c.l.s4 1983009808
        %v2207 = vunpack.c.0.s8 %v2206
        %v2208 = vlaneseq
        %v2209 = vshrl.u32 %v2208, 7
        %v2210 = vsub.s32 %v2207, %v2209
        %v2211 = vrot.slane %v2203, %v2210
        %v2213 = vunpack.c.l.s4 1983009808
        %v2214 = vunpack.c.0.s8 %v2213
        %v2215 = vlaneseq
        %v2216 = vshrl.u32 %v2215, 7
        %v2217 = vsub.s32 %v2214, %v2216
        %v2218 = vrot.slane %v2204, %v2217
        %v2219 = vcombine.low %v2149, %v2153
        %v2220 = vcombine.high %v2149, %v2153
        %v2222 = vunpack.c.l.s4 1983009808
        %v2223 = vunpack.c.0.s8 %v2222
        %v2224 = vlaneseq
        %v2225 = vshrl.u32 %v2224, 7
        %v2226 = vsub.s32 %v2223, %v2225
        %v2227 = vrot.slane %v2219, %v2226
        %v2229 = vunpack.c.l.s4 1983009808
        %v2230 = vunpack.c.0.s8 %v2229
        %v2231 = vlaneseq
        %v2232 = vshrl.u32 %v2231, 7
        %v2233 = vsub.s32 %v2230, %v2232
        %v2234 = vrot.slane %v2220, %v2233
        %v2235 = vcombine.low %v2179, %v2195
        %v2236 = vcombine.high %v2179, %v2195
        %v2238 = vunpack.c.l.s4 1934713408
        %v2239 = vunpack.c.0.s8 %v2238
        %v2240 = vlaneseq
        %v2241 = vshrl.u32 %v2240, 7
        %v2242 = vsub.s32 %v2239, %v2241
        %v2243 = vrot.slane %v2235, %v2242
        %v2245 = vunpack.c.l.s4 1934713408
        %v2246 = vunpack.c.0.s8 %v2245
        %v2247 = vlaneseq
        %v2248 = vshrl.u32 %v2247, 7
        %v2249 = vsub.s32 %v2246, %v2248
        %v2250 = vrot.slane %v2236, %v2249
        %v2251 = vcombine.low %v2186, %v2202
        %v2252 = vcombine.high %v2186, %v2202
        %v2254 = vunpack.c.l.s4 1934713408
        %v2255 = vunpack.c.0.s8 %v2254
        %v2256 = vlaneseq
        %v2257 = vshrl.u32 %v2256, 7
        %v2258 = vsub.s32 %v2255, %v2257
        %v2259 = vrot.slane %v2251, %v2258
        %v2261 = vunpack.c.l.s4 1934713408
        %v2262 = vunpack.c.0.s8 %v2261
        %v2263 = vlaneseq
        %v2264 = vshrl.u32 %v2263, 7
        %v2265 = vsub.s32 %v2262, %v2264
        %v2266 = vrot.slane %v2252, %v2265
        %v2267 = vcombine.low %v2211, %v2227
        %v2268 = vcombine.high %v2211, %v2227
        %v2270 = vunpack.c.l.s4 1934713408
        %v2271 = vunpack.c.0.s8 %v2270
        %v2272 = vlaneseq
        %v2273 = vshrl.u32 %v2272, 7
        %v2274 = vsub.s32 %v2271, %v2273
        %v2275 = vrot.slane %v2267, %v2274
        %v2277 = vunpack.c.l.s4 1934713408
        %v2278 = vunpack.c.0.s8 %v2277
        %v2279 = vlaneseq
        %v2280 = vshrl.u32 %v2279, 7
        %v2281 = vsub.s32 %v2278, %v2280
        %v2282 = vrot.slane %v2268, %v2281
        %v2283 = vcombine.low %v2218, %v2234
        %v2284 = vcombine.high %v2218, %v2234
        %v2286 = vunpack.c.l.s4 1934713408
        %v2287 = vunpack.c.0.s8 %v2286
        %v2288 = vlaneseq
        %v2289 = vshrl.u32 %v2288, 7
        %v2290 = vsub.s32 %v2287, %v2289
        %v2291 = vrot.slane %v2283, %v2290
        %v2293 = vunpack.c.l.s4 1934713408
        %v2294 = vunpack.c.0.s8 %v2293
        %v2295 = vlaneseq
        %v2296 = vshrl.u32 %v2295, 7
        %v2297 = vsub.s32 %v2294, %v2296
        %v2298 = vrot.slane %v2284, %v2297
        %v2299 = vcombine.low %v2243, %v2275
        %v2300 = vcombine.high %v2243, %v2275
        %v2301 = vcombine.low %v2250, %v2282
        %v2302 = vcombine.high %v2250, %v2282
        %v2303 = vcombine.low %v2259, %v2291
        %v2304 = vcombine.high %v2259, %v2291
        %v2305 = vcombine.low %v2266, %v2298
        %v2306 = vcombine.high %v2266, %v2298
        %v2307 = vcombine.low %v2132, %v2134
        %v2308 = vcombine.high %v2132, %v2134
        %v2310 = vunpack.c.l.s4 1983009808
        %v2311 = vunpack.c.0.s8 %v2310
        %v2312 = vlaneseq
        %v2313 = vshrl.u32 %v2312, 7
        %v2314 = vsub.s32 %v2311, %v2313
        %v2315 = vrot.slane %v2307, %v2314
        %v2317 = vunpack.c.l.s4 1983009808
        %v2318 = vunpack.c.0.s8 %v2317
        %v2319 = vlaneseq
        %v2320 = vshrl.u32 %v2319, 7
        %v2321 = vsub.s32 %v2318, %v2320
        %v2322 = vrot.slane %v2308, %v2321
        %v2323 = vcombine.low %v2157, %v2161
        %v2324 = vcombine.high %v2157, %v2161
        %v2326 = vunpack.c.l.s4 1983009808
        %v2327 = vunpack.c.0.s8 %v2326
        %v2328 = vlaneseq
        %v2329 = vshrl.u32 %v2328, 7
        %v2330 = vsub.s32 %v2327, %v2329
        %v2331 = vrot.slane %v2323, %v2330
        %v2333 = vunpack.c.l.s4 1983009808
        %v2334 = vunpack.c.0.s8 %v2333
        %v2335 = vlaneseq
        %v2336 = vshrl.u32 %v2335, 7
        %v2337 = vsub.s32 %v2334, %v2336
        %v2338 = vrot.slane %v2324, %v2337
        %v2339 = vcombine.low %v2136, %v2138
        %v2340 = vcombine.high %v2136, %v2138
        %v2342 = vunpack.c.l.s4 1983009808
        %v2343 = vunpack.c.0.s8 %v2342
        %v2344 = vlaneseq
        %v2345 = vshrl.u32 %v2344, 7
        %v2346 = vsub.s32 %v2343, %v2345
        %v2347 = vrot.slane %v2339, %v2346
        %v2349 = vunpack.c.l.s4 1983009808
        %v2350 = vunpack.c.0.s8 %v2349
        %v2351 = vlaneseq
        %v2352 = vshrl.u32 %v2351, 7
        %v2353 = vsub.s32 %v2350, %v2352
        %v2354 = vrot.slane %v2340, %v2353
        %v2355 = vcombine.low %v2165, %v2169
        %v2356 = vcombine.high %v2165, %v2169
        %v2358 = vunpack.c.l.s4 1983009808
        %v2359 = vunpack.c.0.s8 %v2358
        %v2360 = vlaneseq
        %v2361 = vshrl.u32 %v2360, 7
        %v2362 = vsub.s32 %v2359, %v2361
        %v2363 = vrot.slane %v2355, %v2362
        %v2365 = vunpack.c.l.s4 1983009808
        %v2366 = vunpack.c.0.s8 %v2365
        %v2367 = vlaneseq
        %v2368 = vshrl.u32 %v2367, 7
        %v2369 = vsub.s32 %v2366, %v2368
        %v2370 = vrot.slane %v2356, %v2369
        %v2371 = vcombine.low %v2315, %v2331
        %v2372 = vcombine.high %v2315, %v2331
        %v2374 = vunpack.c.l.s4 1934713408
        %v2375 = vunpack.c.0.s8 %v2374
        %v2376 = vlaneseq
        %v2377 = vshrl.u32 %v2376, 7
        %v2378 = vsub.s32 %v2375, %v2377
        %v2379 = vrot.slane %v2371, %v2378
        %v2381 = vunpack.c.l.s4 1934713408
        %v2382 = vunpack.c.0.s8 %v2381
        %v2383 = vlaneseq
        %v2384 = vshrl.u32 %v2383, 7
        %v2385 = vsub.s32 %v2382, %v2384
        %v2386 = vrot.slane %v2372, %v2385
        %v2387 = vcombine.low %v2322, %v2338
        %v2388 = vcombine.high %v2322, %v2338
        %v2390 = vunpack.c.l.s4 1934713408
        %v2391 = vunpack.c.0.s8 %v2390
        %v2392 = vlaneseq
        %v2393 = vshrl.u32 %v2392, 7
        %v2394 = vsub.s32 %v2391, %v2393
        %v2395 = vrot.slane %v2387, %v2394
        %v2397 = vunpack.c.l.s4 1934713408
        %v2398 = vunpack.c.0.s8 %v2397
        %v2399 = vlaneseq
        %v2400 = vshrl.u32 %v2399, 7
        %v2401 = vsub.s32 %v2398, %v2400
        %v2402 = vrot.slane %v2388, %v2401
        %v2403 = vcombine.low %v2347, %v2363
        %v2404 = vcombine.high %v2347, %v2363
        %v2406 = vunpack.c.l.s4 1934713408
        %v2407 = vunpack.c.0.s8 %v2406
        %v2408 = vlaneseq
        %v2409 = vshrl.u32 %v2408, 7
        %v2410 = vsub.s32 %v2407, %v2409
        %v2411 = vrot.slane %v2403, %v2410
        %v2413 = vunpack.c.l.s4 1934713408
        %v2414 = vunpack.c.0.s8 %v2413
        %v2415 = vlaneseq
        %v2416 = vshrl.u32 %v2415, 7
        %v2417 = vsub.s32 %v2414, %v2416
        %v2418 = vrot.slane %v2404, %v2417
        %v2419 = vcombine.low %v2354, %v2370
        %v2420 = vcombine.high %v2354, %v2370
        %v2422 = vunpack.c.l.s4 1934713408
        %v2423 = vunpack.c.0.s8 %v2422
        %v2424 = vlaneseq
        %v2425 = vshrl.u32 %v2424, 7
        %v2426 = vsub.s32 %v2423, %v2425
        %v2427 = vrot.slane %v2419, %v2426
        %v2429 = vunpack.c.l.s4 1934713408
        %v2430 = vunpack.c.0.s8 %v2429
        %v2431 = vlaneseq
        %v2432 = vshrl.u32 %v2431, 7
        %v2433 = vsub.s32 %v2430, %v2432
        %v2434 = vrot.slane %v2420, %v2433
        %v2435 = vcombine.low %v2379, %v2411
        %v2436 = vcombine.high %v2379, %v2411
        %v2437 = vcombine.low %v2386, %v2418
        %v2438 = vcombine.high %v2386, %v2418
        %v2439 = vcombine.low %v2395, %v2427
        %v2440 = vcombine.high %v2395, %v2427
        %v2441 = vcombine.low %v2402, %v2434
        %v2442 = vcombine.high %v2402, %v2434
        %v2443 = vsel %vm1295, %v2299, 0.0
        %v2444 = vsel %vm1295, %v2435, 0.0
        %v2445 = vadd.f32 %v2443, %v2444
        %v2446 = vrot.slane %v2445, 4
        %v2447 = vadd.f32 %v2445, %v2446
        %v2448 = vrot.slane %v2447, 2
        %v2449 = vadd.f32 %v2447, %v2448
        %v2450 = vrot.slane %v2449, 1
        %v2451 = vadd.f32 %v2449, %v2450
        %v2452 = vsel %vm1295, %v2300, 0.0
        %v2453 = vsel %vm1295, %v2436, 0.0
        %v2454 = vadd.f32 %v2452, %v2453
        %v2455 = vrot.slane %v2454, 4
        %v2456 = vadd.f32 %v2454, %v2455
        %v2457 = vrot.slane %v2456, 2
        %v2458 = vadd.f32 %v2456, %v2457
        %v2459 = vrot.slane %v2458, 1
        %v2460 = vadd.f32 %v2458, %v2459
        %v2461 = vsel %vm1295, %v2301, 0.0
        %v2462 = vsel %vm1295, %v2437, 0.0
        %v2463 = vadd.f32 %v2461, %v2462
        %v2464 = vrot.slane %v2463, 4
        %v2465 = vadd.f32 %v2463, %v2464
        %v2466 = vrot.slane %v2465, 2
        %v2467 = vadd.f32 %v2465, %v2466
        %v2468 = vrot.slane %v2467, 1
        %v2469 = vadd.f32 %v2467, %v2468
        %v2470 = vsel %vm1295, %v2302, 0.0
        %v2471 = vsel %vm1295, %v2438, 0.0
        %v2472 = vadd.f32 %v2470, %v2471
        %v2473 = vrot.slane %v2472, 4
        %v2474 = vadd.f32 %v2472, %v2473
        %v2475 = vrot.slane %v2474, 2
        %v2476 = vadd.f32 %v2474, %v2475
        %v2477 = vrot.slane %v2476, 1
        %v2478 = vadd.f32 %v2476, %v2477
        %v2479 = vsel %vm1295, %v2303, 0.0
        %v2480 = vsel %vm1295, %v2439, 0.0
        %v2481 = vadd.f32 %v2479, %v2480
        %v2482 = vrot.slane %v2481, 4
        %v2483 = vadd.f32 %v2481, %v2482
        %v2484 = vrot.slane %v2483, 2
        %v2485 = vadd.f32 %v2483, %v2484
        %v2486 = vrot.slane %v2485, 1
        %v2487 = vadd.f32 %v2485, %v2486
        %v2488 = vsel %vm1295, %v2304, 0.0
        %v2489 = vsel %vm1295, %v2440, 0.0
        %v2490 = vadd.f32 %v2488, %v2489
        %v2491 = vrot.slane %v2490, 4
        %v2492 = vadd.f32 %v2490, %v2491
        %v2493 = vrot.slane %v2492, 2
        %v2494 = vadd.f32 %v2492, %v2493
        %v2495 = vrot.slane %v2494, 1
        %v2496 = vadd.f32 %v2494, %v2495
        %v2497 = vsel %vm1295, %v2305, 0.0
        %v2498 = vsel %vm1295, %v2441, 0.0
        %v2499 = vadd.f32 %v2497, %v2498
        %v2500 = vrot.slane %v2499, 4
        %v2501 = vadd.f32 %v2499, %v2500
        %v2502 = vrot.slane %v2501, 2
        %v2503 = vadd.f32 %v2501, %v2502
        %v2504 = vrot.slane %v2503, 1
        %v2505 = vadd.f32 %v2503, %v2504
        %v2506 = vsel %vm1295, %v2306, 0.0
        %v2507 = vsel %vm1295, %v2442, 0.0
        %v2508 = vadd.f32 %v2506, %v2507
        %v2509 = vrot.slane %v2508, 4
        %v2510 = vadd.f32 %v2508, %v2509
        %v2511 = vrot.slane %v2510, 2
        %v2512 = vadd.f32 %v2510, %v2511
        %v2513 = vrot.slane %v2512, 1
        %v2514 = vadd.f32 %v2512, %v2513
        %v2523 = vsel %vm1376, %v2460, %v2451
        %v2524 = vsel %vm1378, %v2469, %v2523
        %v2525 = vsel %vm1380, %v2478, %v2524
        %v2526 = vsel %vm1382, %v2487, %v2525
        %v2527 = vsel %vm1384, %v2496, %v2526
        %v2528 = vsel %vm1386, %v2505, %v2527
        %v2529 = vsel %vm1388, %v2514, %v2528
        %v2531 = vadd.f32 %v1391, %v2529
        %2532 = vst.msk [vmem:[#allocation2] sm:$0xff] %vm1295, %v2531
        %p2533 = scmp.eq.s32.totalorder %s22, 1
        // Predicated region
        $region49: #{tpu_custom_call.1} parent=31 // pred_check
          %p2534 = pneg %p2533
        $region50: #{tpu_custom_call.1} parent=31 // pred_check_branch
          %2536 = sbr.rel (%p2534) target = $region52
        $region51: #{tpu_custom_call.1} parent=31 // pred_region
          %v2537 = vld [vmem:[#allocation2] sm:$0xff]
          %v2538 = vsub.f32 %v2537, 1.0
          %2539 = vst.msk [vmem:[#allocation9] sm:$0xff] %vm1295, %v2538
        $region52: #{tpu_custom_call.1} parent=31 // pred_fallthru
          _
        // Predicated region
        $region53: #{tpu_custom_call.1} parent=31 // pred_check
          %p2540 = pneg %p120
        $region54: #{tpu_custom_call.1} parent=31 // pred_check_branch
          %2542 = sbr.rel (%p2540) target = $region56
        $region55: #{tpu_custom_call.1} parent=31 // pred_region
          %s2544 = ssub.s32 128, 128
          %2545 = vsyncadd [#allocation5], %s2544
          %s2546 = smul.addr %s21, 128
          %s2547 = scalar_lea.hbm %s3, %s2546
          %s2549 = sshll.u32 [#allocation9], 4
          %s2550 = int_to_ptr.vmem [resolvable:$true] %s2549
          %2552 = dma.vmem_to_hbm [thread:$0]  %s2550, 128, %s2547, [#allocation5]
        $region56: #{tpu_custom_call.1} parent=31 // pred_fallthru
          _
        // Predicated region
        $region57: #{tpu_custom_call.1} parent=31 // pred_check
          %p2553 = pneg %p120
        $region58: #{tpu_custom_call.1} parent=31 // pred_check_branch
          %2555 = sbr.rel (%p2553) target = $region60
        $region59: #{tpu_custom_call.1} parent=31 // pred_region
          %2556 = dma.done [#allocation5], 128
        $region60: #{tpu_custom_call.1} parent=31 // pred_fallthru
          _
      $region32: #{tpu_custom_call.1} parent=5 // pred_fallthru
        _
      %p2557 = scmp.le.s32.totalorder 2, %s12
      // Predicated region
      $region61: #{tpu_custom_call.1} parent=5 // pred_check
        %p2558 = pneg %p2557
      $region62: #{tpu_custom_call.1} parent=5 // pred_check_branch
        %2560 = sbr.rel (%p2558) target = $region64
      $region63: #{tpu_custom_call.1} parent=5 // pred_region
        %s2561 = ssub.s32 %s12, 2
      $region64: #{tpu_custom_call.1} parent=5 // pred_fallthru
        _
    $region6: #{tpu_custom_call.1} parent=1 // loop_footer
      %s16 = sadd.s32 1, %s12
    $region7: #{tpu_custom_call.1} parent=1 // loop_footer_branch
      %11 = sbr.rel target = $region3
    $region8: #{tpu_custom_call.1} parent=1 // loop_exit
      _
    %2562 = vsyncpa [#allocation4], 1
    %s2563 = scalar_lea.sflag [#allocation4], 1
    %2564 = vsyncpa %s2563, 1
    %2565 = vsyncpa [#allocation7], 1
    %2566 = vsyncpa [#allocation5], 1
    %s2567 = scalar_lea.sflag [#allocation5], 1
    %2568 = vsyncpa %s2567, 1

</llo_original>
